<compile_context>
chip_gen: v7x
topology: tpu7x:2x2x1
jax: 0.10.0
libtpu: 0.0.40
codegen_flags: <defaults>
</compile_context>

<pallas_src>
import functools
from typing import NamedTuple

import jax
import jax.numpy as jnp
from jax.experimental import pallas as pl
from jax.experimental.pallas import tpu as pltpu


def _round_up(x, m):
    return (x + m - 1) // m * m


class PreparedMLP(NamedTuple):
    # padded, bf16-at-rest parameters (pad/cast once at init, not per call)
    w1: jax.Array      # (in_p, hid_p)   bf16
    gamma: jax.Array   # (1, hid_p)      f32
    beta: jax.Array    # (1, hid_p)      f32
    w2: jax.Array      # (hid_p, out_p)  bf16
    b2: jax.Array      # (1, out_p)      f32
    # static config
    in_dim: int
    hidden: int
    out_dim: int
    in_p: int
    hid_p: int
    out_p: int
    out_ps: int        # per-split output width
    block_h: int
    block_o: int
    num_splits: int
    eps: float


def prepare_params(w1, b1, gamma, beta, w2, b2, *, num_splits=1,
                   block_h=None, block_o=None, eps=1e-5):
    """Pad feature axes to MXU/lane-friendly sizes and cast weights to bf16 -- once, at init.

    b1 is accepted for API parity with nn.Linear but dropped: training-mode BatchNorm subtracts
    the batch mean, which contains b1 exactly, so it is a mathematical no-op.
    (If eval-mode / running-stats BN were ever needed, b1 must be reinstated.)
    num_splits=2 enables megacore sharding of the output columns on v7x (Linear1 is then
    duplicated once per core); keep the default 1 on single-TensorCore chips (v5e / v6e).
    """
    del b1
    in_dim, hidden = w1.shape
    assert w2.shape[0] == hidden
    out_dim = w2.shape[1]
    assert num_splits >= 1

    in_p = _round_up(in_dim, 128)

    hid_p = _round_up(hidden, 256)                     # 256-multiples: v6e/v7x MXU is 2x256x256
    if block_h is None:
        block_h = 512 if hid_p % 512 == 0 else 256
    assert block_h % 128 == 0
    hid_p = _round_up(hid_p, block_h)

    out_ps = _round_up(-(-out_dim // num_splits), 128)  # per-split output width, 128-aligned
    if block_o is None:
        block_o = out_ps if out_ps <= 1024 else 512     # prefer a single out-tile per split
    assert block_o % 128 == 0
    out_ps = _round_up(out_ps, block_o)
    out_p = out_ps * num_splits

    f32 = jnp.float32
    w1_p = jnp.pad(w1.astype(f32), ((0, in_p - in_dim), (0, hid_p - hidden))).astype(jnp.bfloat16)
    w2_p = jnp.pad(w2.astype(f32), ((0, hid_p - hidden), (0, out_p - out_dim))).astype(jnp.bfloat16)
    gamma_p = jnp.pad(gamma.reshape(1, hidden).astype(f32),
                      ((0, 0), (0, hid_p - hidden)), constant_values=1.0)
    beta_p = jnp.pad(beta.reshape(1, hidden).astype(f32), ((0, 0), (0, hid_p - hidden)))
    b2_p = jnp.pad(b2.reshape(1, out_dim).astype(f32), ((0, 0), (0, out_p - out_dim)))

    return PreparedMLP(w1_p, gamma_p, beta_p, w2_p, b2_p,
                       in_dim, hidden, out_dim, in_p, hid_p, out_p, out_ps,
                       block_h, block_o, num_splits, eps)


def _projection_mlp_kernel(x_ref, w1_ref, gamma_ref, beta_ref, w2_ref, b2_ref,
                           o_ref, h_cache, *, inv_n, eps):
    j = pl.program_id(1)          # out-tile index within the split
    k = pl.program_id(2)          # hidden-feature tile (innermost reduction)

    # ---- Linear1 + BatchNorm1d(train) + ReLU: computed once per hidden tile per split ----
    @pl.when(j == 0)
    def _compute_hidden_tile():
        # b1 omitted (exactly cancelled by the mean subtraction).  Padded batch rows are exactly
        # zero, so one-pass sums divided by the *real* batch size (inv_n) stay exact.
        h = jnp.dot(x_ref[...], w1_ref[...], preferred_element_type=jnp.float32)
        s1 = jnp.sum(h, axis=0, keepdims=True)
        s2 = jnp.sum(h * h, axis=0, keepdims=True)
        mean = s1 * inv_n
        var = jnp.maximum(s2 * inv_n - mean * mean, 0.0)    # biased var, one pass
        scale = gamma_ref[...] * jax.lax.rsqrt(var + eps)   # gamma fused into the rsqrt
        h_act = jnp.maximum((h - mean) * scale + beta_ref[...], 0.0)
        h_cache[k] = h_act.astype(h_cache.dtype)

    # ---- Linear2: accumulate directly into the resident f32 output block ----
    @pl.when(k == 0)
    def _init_out():
        o_ref[...] = jnp.broadcast_to(b2_ref[...], o_ref.shape)

    o_ref[...] += jnp.dot(h_cache[k], w2_ref[...], preferred_element_type=jnp.float32)


def projection_mlp(x, p: PreparedMLP):
    """Forward pass: (N, in_dim) f32 -> (N, out_dim) f32 with training-mode BatchNorm stats.

    The batch axis is never tiled across the grid (BN statistics need the full batch).
    """
    n, in_dim = x.shape
    assert in_dim == p.in_dim
    assert n >= 2, "training-mode BatchNorm1d needs batch >= 2"

    # Pad batch to a sublane-friendly multiple of 16 (bf16 packing).  Padded rows are exactly
    # zero and are excluded from the BN statistics via inv_n = 1 / n (real batch size).
    n_p = _round_up(n, 16)
    x_p = jnp.pad(x, ((0, n_p - n), (0, p.in_p - in_dim))).astype(jnp.bfloat16)

    J = p.out_ps // p.block_o
    K = p.hid_p // p.block_h
    S = p.num_splits
    grid = (S, J, K)

    # --- VMEM budget (single-counted; per-step inputs are double-buffered by the pipeline) ---
    working = (
        n_p * p.in_p * 2                         # x (single-buffered, constant block index)
        + 2 * p.in_p * p.block_h * 2             # w1 tile (bf16, double-buffered)
        + 2 * 2 * p.block_h * 4                  # gamma / beta tiles
        + 2 * p.block_h * p.block_o * 2          # w2 tile (bf16, double-buffered)
        + 2 * p.block_o * 4                      # b2 tile
        + 2 * n_p * p.block_o * 4                # output block (f32)
        + n_p * p.hid_p * 2                      # h_act cache (bf16 scratch)
        + 3 * n_p * p.block_h * 4                # f32 temporaries headroom
    )
    try:
        vmem_cap = int(pltpu.get_tpu_info().vmem_capacity_bytes)
    except Exception:
        vmem_cap = 64 * 1024 * 1024              # conservative fallback (v7x-sized)
    vmem_limit = int(min(max(int(working * 1.15), 32 * 1024 * 1024), int(0.8 * vmem_cap)))

    cost = pl.CostEstimate(
        flops=2 * n_p * p.in_p * p.hid_p * S + 2 * n_p * p.hid_p * p.out_p,
        transcendentals=p.hid_p * S,                           # one rsqrt per feature per split
        bytes_accessed=(x_p.size * 2 + p.w1.size * 2 * S * J + p.w2.size * 2
                        + (p.gamma.size + p.beta.size) * 4 * S * J
                        + p.b2.size * 4 + n_p * p.out_p * 4),
    )

    kernel = functools.partial(_projection_mlp_kernel, inv_n=1.0 / n, eps=p.eps)
    out_shape = jax.ShapeDtypeStruct((n_p, p.out_p), jnp.float32)

    def build(x_single_buffered):
        if x_single_buffered:
            x_spec = pl.BlockSpec((n_p, p.in_p), lambda c, j, k: (0, 0),
                                  pipeline_mode=pl.Buffered(1))
        else:
            x_spec = pl.BlockSpec((n_p, p.in_p), lambda c, j, k: (0, 0))
        return pl.pallas_call(
            kernel,
            out_shape=out_shape,
            grid_spec=pltpu.PrefetchScalarGridSpec(
                num_scalar_prefetch=0,
                grid=grid,
                in_specs=[
                    x_spec,                                                        # x (full batch)
                    pl.BlockSpec((p.in_p, p.block_h), lambda c, j, k: (0, k)),     # w1 hidden tile
                    pl.BlockSpec((1, p.block_h), lambda c, j, k: (0, k)),          # gamma tile
                    pl.BlockSpec((1, p.block_h), lambda c, j, k: (0, k)),          # beta tile
                    pl.BlockSpec((p.block_h, p.block_o),
                                 lambda c, j, k: (k, c * J + j)),                  # w2 (k, out) tile
                    pl.BlockSpec((1, p.block_o), lambda c, j, k: (0, c * J + j)),  # b2 out tile
                ],
                out_specs=pl.BlockSpec((n_p, p.block_o), lambda c, j, k: (0, c * J + j)),
                scratch_shapes=[pltpu.VMEM((K, n_p, p.block_h), jnp.bfloat16)],    # h_act cache
            ),
            compiler_params=pltpu.CompilerParams(
                dimension_semantics=("parallel", "arbitrary", "arbitrary"),
                vmem_limit_bytes=vmem_limit,
            ),
            cost_estimate=cost,
        )

    args = (x_p, p.w1, p.gamma, p.beta, p.w2, p.b2)
    try:
        out = build(True)(*args)
    except Exception:
        # JAX version without single-buffer pipeline_mode support: fall back to the default
        # double-buffered x block (identical results, slightly more VMEM).
        out = build(False)(*args)

    return out[:n, :p.out_dim]


def init_params(key, in_dim, hidden_dim, out_dim):
    k1, k2, k3, k4 = jax.random.split(key, 4)
    # Deterministic, PyTorch-Linear-style uniform init (bound = 1/sqrt(fan_in)).
    bound1 = 1.0 / (in_dim ** 0.5)
    bound2 = 1.0 / (hidden_dim ** 0.5)
    w1 = jax.random.uniform(k1, (in_dim, hidden_dim), jnp.float32, -bound1, bound1)
    b1 = jax.random.uniform(k2, (hidden_dim,), jnp.float32, -bound1, bound1)
    w2 = jax.random.uniform(k3, (hidden_dim, out_dim), jnp.float32, -bound2, bound2)
    b2 = jax.random.uniform(k4, (out_dim,), jnp.float32, -bound2, bound2)
    gamma = jnp.ones((hidden_dim,), jnp.float32)     # BatchNorm1d weight
    beta = jnp.zeros((hidden_dim,), jnp.float32)     # BatchNorm1d bias
    return w1, b1, gamma, beta, w2, b2


if __name__ == "__main__":
    key = jax.random.PRNGKey(0)
    kx, kp = jax.random.split(key)

    # Small shapes exercising: non-128-aligned in_dim (feature padding), non-multiple-of-16 batch
    # (batch padding with exact BN stats), 2 hidden tiles (k reduction + h_act cache), and a
    # 2-tile output axis (cache reuse for j > 0).
    batch, in_dim, hidden_dim, out_dim = 14, 96, 512, 384

    x = jax.random.normal(kx, (batch, in_dim), jnp.float32)
    w1, b1, gamma, beta, w2, b2 = init_params(kp, in_dim, hidden_dim, out_dim)

    prepared = prepare_params(w1, b1, gamma, beta, w2, b2, block_h=256, block_o=256)
    out = projection_mlp(x, prepared)
    jax.block_until_ready(out)
    assert out.shape == (batch, out_dim)

    # Also exercise the explicit output split (megacore path on v7x; runs sequentially elsewhere).
    prepared2 = prepare_params(w1, b1, gamma, beta, w2, b2, num_splits=2,
                               block_h=256, block_o=128)
    out2 = projection_mlp(x, prepared2)
    jax.block_until_ready(out2)
    assert jnp.allclose(out, out2, atol=1e-3, rtol=1e-3), "split / no-split mismatch"

    # --- Reference 1: same precision recipe as the kernel (bf16 MXU inputs, f32 stats) ---
    xb, w1b, w2b = (a.astype(jnp.bfloat16) for a in (x, w1, w2))
    h = jnp.dot(xb, w1b, preferred_element_type=jnp.float32)
    mean = h.mean(0, keepdims=True)
    var = (h * h).mean(0, keepdims=True) - mean * mean
    h_act = jnp.maximum((h - mean) * (gamma * jax.lax.rsqrt(var + 1e-5)) + beta, 0.0)
    ref_bf = jnp.dot(h_act.astype(jnp.bfloat16), w2b, preferred_element_type=jnp.float32) + b2
    assert jnp.allclose(out, ref_bf, atol=5e-3, rtol=5e-3), "mismatch vs bf16 reference"

    # --- Reference 2: full-f32 PyTorch semantics (including b1, which training-mode BN cancels) ---
    h32 = x @ w1 + b1
    m32 = h32.mean(0, keepdims=True)
    v32 = ((h32 - m32) ** 2).mean(0, keepdims=True)
    ref32 = jnp.maximum((h32 - m32) / jnp.sqrt(v32 + 1e-5) * gamma + beta, 0.0) @ w2 + b2
    assert jnp.allclose(out, ref32, atol=5e-2, rtol=5e-2), "mismatch vs f32 reference"

    print("KERNEL_OK")
</pallas_src>

<mosaic_0001>
module attributes {stable_mosaic.version = 11 : i64} {
  func.func @_projection_mlp_kernel(%arg0: i32, %arg1: i32, %arg2: i32, %arg3: memref<16x128xbf16, #tpu.memory_space<vmem>>, %arg4: memref<128x256xbf16, #tpu.memory_space<vmem>>, %arg5: memref<1x256xf32, #tpu.memory_space<vmem>>, %arg6: memref<1x256xf32, #tpu.memory_space<vmem>>, %arg7: memref<256x256xbf16, #tpu.memory_space<vmem>>, %arg8: memref<1x256xf32, #tpu.memory_space<vmem>>, %arg9: memref<16x256xf32, #tpu.memory_space<vmem>>, %arg10: memref<2x16x256xbf16, #tpu.memory_space<vmem>>) attributes {dimension_semantics = [#tpu.dimension_semantics<parallel>, #tpu.dimension_semantics<arbitrary>, #tpu.dimension_semantics<arbitrary>], iteration_bounds = array<i64: 1, 2, 2>, scalar_prefetch = 0 : i64, scratch_operands = 1 : i64, tpu.core_type = #tpu.core_type<tc>, window_params = [{pipeline_mode = #tpu.pipeline_mode<synchronous>, transform_indices = @transform_0, window_bounds = array<i64: 16, 128>}, {transform_indices = @transform_1, window_bounds = array<i64: 128, 256>}, {transform_indices = @transform_2, window_bounds = array<i64: 1, 256>}, {transform_indices = @transform_3, window_bounds = array<i64: 1, 256>}, {transform_indices = @transform_4, window_bounds = array<i64: 256, 256>}, {transform_indices = @transform_5, window_bounds = array<i64: 1, 256>}, {transform_indices = @transform_6, window_bounds = array<i64: 16, 256>}]} {
    %c0_i32 = arith.constant 0 : i32
    %0 = arith.cmpi eq, %arg1, %c0_i32 : i32
    %1 = arith.extui %0 : i1 to i32
    %c0_i32_0 = arith.constant 0 : i32
    %2 = arith.cmpi ne, %1, %c0_i32_0 : i32
    scf.if %2 {
      %c0_10 = arith.constant 0 : index
      %c0_11 = arith.constant 0 : index
      %14 = vector.load %arg3[%c0_10, %c0_11] : memref<16x128xbf16, #tpu.memory_space<vmem>>, vector<16x128xbf16>
      %c0_12 = arith.constant 0 : index
      %c0_13 = arith.constant 0 : index
      %15 = vector.load %arg4[%c0_12, %c0_13] : memref<128x256xbf16, #tpu.memory_space<vmem>>, vector<128x256xbf16>
      %cst_14 = arith.constant dense<0.000000e+00> : vector<16x256xf32>
      %16 = tpu.matmul %14, %15, %cst_14 {dimension_numbers = #tpu.dot_dimension_numbers<[1], [0], [0], [1], [0, 0, 1, 1], [], []>} : vector<16x128xbf16>, vector<128x256xbf16>, vector<16x256xf32> -> vector<16x256xf32>
      %cst_15 = arith.constant dense<0.000000e+00> : vector<256xf32>
      %17 = vector.multi_reduction <add>, %16, %cst_15 [0] : vector<16x256xf32> to vector<256xf32>
      %18 = vector.shape_cast %17 : vector<256xf32> to vector<1x256xf32>
      %19 = arith.mulf %16, %16 : vector<16x256xf32>
      %cst_16 = arith.constant dense<0.000000e+00> : vector<256xf32>
      %20 = vector.multi_reduction <add>, %19, %cst_16 [0] : vector<16x256xf32> to vector<256xf32>
      %21 = vector.shape_cast %20 : vector<256xf32> to vector<1x256xf32>
      %cst_17 = arith.constant 0.0714285746 : f32
      %22 = vector.broadcast %cst_17 : f32 to vector<1x256xf32>
      %23 = arith.mulf %18, %22 : vector<1x256xf32>
      %cst_18 = arith.constant 0.0714285746 : f32
      %24 = vector.broadcast %cst_18 : f32 to vector<1x256xf32>
      %25 = arith.mulf %21, %24 : vector<1x256xf32>
      %26 = arith.mulf %23, %23 : vector<1x256xf32>
      %27 = arith.subf %25, %26 : vector<1x256xf32>
      %cst_19 = arith.constant 0.000000e+00 : f32
      %28 = vector.broadcast %cst_19 : f32 to vector<1x256xf32>
      %29 = arith.maximumf %27, %28 : vector<1x256xf32>
      %c0_20 = arith.constant 0 : index
      %c0_21 = arith.constant 0 : index
      %30 = vector.load %arg5[%c0_20, %c0_21] : memref<1x256xf32, #tpu.memory_space<vmem>>, vector<1x256xf32>
      %cst_22 = arith.constant 9.99999974E-6 : f32
      %31 = vector.broadcast %cst_22 : f32 to vector<1x256xf32>
      %32 = arith.addf %29, %31 : vector<1x256xf32>
      %33 = math.rsqrt %32 : vector<1x256xf32>
      %34 = arith.mulf %30, %33 : vector<1x256xf32>
      %35 = vector.broadcast %23 : vector<1x256xf32> to vector<16x256xf32>
      %36 = arith.subf %16, %35 : vector<16x256xf32>
      %37 = vector.broadcast %34 : vector<1x256xf32> to vector<16x256xf32>
      %38 = arith.mulf %36, %37 : vector<16x256xf32>
      %c0_23 = arith.constant 0 : index
      %c0_24 = arith.constant 0 : index
      %39 = vector.load %arg6[%c0_23, %c0_24] : memref<1x256xf32, #tpu.memory_space<vmem>>, vector<1x256xf32>
      %40 = vector.broadcast %39 : vector<1x256xf32> to vector<16x256xf32>
      %41 = arith.addf %38, %40 : vector<16x256xf32>
      %cst_25 = arith.constant 0.000000e+00 : f32
      %42 = vector.broadcast %cst_25 : f32 to vector<16x256xf32>
      %43 = arith.maximumf %41, %42 : vector<16x256xf32>
      %44 = arith.truncf %43 : vector<16x256xf32> to vector<16x256xbf16>
      %45 = arith.index_cast %arg2 : i32 to index
      %c0_26 = arith.constant 0 : index
      %c0_27 = arith.constant 0 : index
      %46 = vector.load %arg10[%45, %c0_26, %c0_27] : memref<2x16x256xbf16, #tpu.memory_space<vmem>>, vector<1x16x256xbf16>
      %47 = vector.shape_cast %46 : vector<1x16x256xbf16> to vector<16x256xbf16>
      %48 = vector.shape_cast %44 : vector<16x256xbf16> to vector<1x16x256xbf16>
      tpu.vector_store %arg10[%45, %c0_26, %c0_27], %48 {strides = array<i32>} : memref<2x16x256xbf16, #tpu.memory_space<vmem>>, vector<1x16x256xbf16>,
    } else {
    }
    %c0_i32_1 = arith.constant 0 : i32
    %3 = arith.cmpi eq, %arg2, %c0_i32_1 : i32
    %4 = arith.extui %3 : i1 to i32
    %c0_i32_2 = arith.constant 0 : i32
    %5 = arith.cmpi ne, %4, %c0_i32_2 : i32
    scf.if %5 {
      %c0_10 = arith.constant 0 : index
      %c0_11 = arith.constant 0 : index
      %14 = vector.load %arg8[%c0_10, %c0_11] : memref<1x256xf32, #tpu.memory_space<vmem>>, vector<1x256xf32>
      %15 = vector.shape_cast %14 : vector<1x256xf32> to vector<1x256xf32>
      %16 = vector.broadcast %15 : vector<1x256xf32> to vector<16x256xf32>
      %c0_12 = arith.constant 0 : index
      %c0_13 = arith.constant 0 : index
      %17 = vector.load %arg9[%c0_12, %c0_13] : memref<16x256xf32, #tpu.memory_space<vmem>>, vector<16x256xf32>
      tpu.vector_store %arg9[%c0_12, %c0_13], %16 {strides = array<i32>} : memref<16x256xf32, #tpu.memory_space<vmem>>, vector<16x256xf32>,
    } else {
    }
    %c0 = arith.constant 0 : index
    %c0_3 = arith.constant 0 : index
    %6 = vector.load %arg9[%c0, %c0_3] : memref<16x256xf32, #tpu.memory_space<vmem>>, vector<16x256xf32>
    %7 = arith.index_cast %arg2 : i32 to index
    %c0_4 = arith.constant 0 : index
    %c0_5 = arith.constant 0 : index
    %8 = vector.load %arg10[%7, %c0_4, %c0_5] : memref<2x16x256xbf16, #tpu.memory_space<vmem>>, vector<1x16x256xbf16>
    %9 = vector.shape_cast %8 : vector<1x16x256xbf16> to vector<16x256xbf16>
    %c0_6 = arith.constant 0 : index
    %c0_7 = arith.constant 0 : index
    %10 = vector.load %arg7[%c0_6, %c0_7] : memref<256x256xbf16, #tpu.memory_space<vmem>>, vector<256x256xbf16>
    %cst = arith.constant dense<0.000000e+00> : vector<16x256xf32>
    %11 = tpu.matmul %9, %10, %cst {dimension_numbers = #tpu.dot_dimension_numbers<[1], [0], [0], [1], [0, 0, 1, 1], [], []>} : vector<16x256xbf16>, vector<256x256xbf16>, vector<16x256xf32> -> vector<16x256xf32>
    %12 = arith.addf %6, %11 : vector<16x256xf32>
    %c0_8 = arith.constant 0 : index
    %c0_9 = arith.constant 0 : index
    %13 = vector.load %arg9[%c0_8, %c0_9] : memref<16x256xf32, #tpu.memory_space<vmem>>, vector<16x256xf32>
    tpu.vector_store %arg9[%c0_8, %c0_9], %12 {strides = array<i32>} : memref<16x256xf32, #tpu.memory_space<vmem>>, vector<16x256xf32>,
    return
  }
  func.func @transform_0(%arg0: i32, %arg1: i32, %arg2: i32) -> (i32, i32) {
    %c0_i32 = arith.constant 0 : i32
    %c0_i32_0 = arith.constant 0 : i32
    %c0_i32_1 = arith.constant 0 : i32
    return %c0_i32, %c0_i32_0 : i32, i32
  }
  func.func @transform_1(%arg0: i32, %arg1: i32, %arg2: i32) -> (i32, i32) {
    %c0_i32 = arith.constant 0 : i32
    %c0_i32_0 = arith.constant 0 : i32
    return %c0_i32, %arg2 : i32, i32
  }
  func.func @transform_2(%arg0: i32, %arg1: i32, %arg2: i32) -> (i32, i32) {
    %c0_i32 = arith.constant 0 : i32
    %c0_i32_0 = arith.constant 0 : i32
    return %c0_i32, %arg2 : i32, i32
  }
  func.func @transform_3(%arg0: i32, %arg1: i32, %arg2: i32) -> (i32, i32) {
    %c0_i32 = arith.constant 0 : i32
    %c0_i32_0 = arith.constant 0 : i32
    return %c0_i32, %arg2 : i32, i32
  }
  func.func @transform_4(%arg0: i32, %arg1: i32, %arg2: i32) -> (i32, i32) {
    %c2_i32 = arith.constant 2 : i32
    %0 = arith.muli %arg0, %c2_i32 : i32
    %1 = arith.addi %0, %arg1 : i32
    %c0_i32 = arith.constant 0 : i32
    return %arg2, %1 : i32, i32
  }
  func.func @transform_5(%arg0: i32, %arg1: i32, %arg2: i32) -> (i32, i32) {
    %c2_i32 = arith.constant 2 : i32
    %0 = arith.muli %arg0, %c2_i32 : i32
    %1 = arith.addi %0, %arg1 : i32
    %c0_i32 = arith.constant 0 : i32
    %c0_i32_0 = arith.constant 0 : i32
    return %c0_i32, %1 : i32, i32
  }
  func.func @transform_6(%arg0: i32, %arg1: i32, %arg2: i32) -> (i32, i32) {
    %c2_i32 = arith.constant 2 : i32
    %0 = arith.muli %arg0, %c2_i32 : i32
    %1 = arith.addi %0, %arg1 : i32
    %c0_i32 = arith.constant 0 : i32
    %c0_i32_0 = arith.constant 0 : i32
    return %c0_i32, %1 : i32, i32
  }
}

module attributes {stable_mosaic.version = 11 : i64} {
  func.func @_projection_mlp_kernel(%arg0: i32, %arg1: i32, %arg2: i32, %arg3: memref<16x128xbf16, #tpu.memory_space<vmem>>, %arg4: memref<128x256xbf16, #tpu.memory_space<vmem>>, %arg5: memref<1x256xf32, #tpu.memory_space<vmem>>, %arg6: memref<1x256xf32, #tpu.memory_space<vmem>>, %arg7: memref<256x256xbf16, #tpu.memory_space<vmem>>, %arg8: memref<1x256xf32, #tpu.memory_space<vmem>>, %arg9: memref<16x256xf32, #tpu.memory_space<vmem>>, %arg10: memref<2x16x256xbf16, #tpu.memory_space<vmem>>) attributes {dimension_semantics = [#tpu.dimension_semantics<parallel>, #tpu.dimension_semantics<arbitrary>, #tpu.dimension_semantics<arbitrary>], iteration_bounds = array<i64: 1, 2, 2>, scalar_prefetch = 0 : i64, scratch_operands = 1 : i64, tpu.core_type = #tpu.core_type<tc>, window_params = [{pipeline_mode = #tpu.pipeline_mode<synchronous>, transform_indices = @transform_0, window_bounds = array<i64: 16, 128>}, {transform_indices = @transform_1, window_bounds = array<i64: 128, 256>}, {transform_indices = @transform_2, window_bounds = array<i64: 1, 256>}, {transform_indices = @transform_3, window_bounds = array<i64: 1, 256>}, {transform_indices = @transform_4, window_bounds = array<i64: 256, 256>}, {transform_indices = @transform_5, window_bounds = array<i64: 1, 256>}, {transform_indices = @transform_6, window_bounds = array<i64: 16, 256>}]} {
    %c0_i32 = arith.constant 0 : i32
    %0 = arith.cmpi eq, %arg1, %c0_i32 : i32
    %1 = arith.extui %0 : i1 to i32
    %c0_i32_0 = arith.constant 0 : i32
    %2 = arith.cmpi ne, %1, %c0_i32_0 : i32
    scf.if %2 {
      %c0_10 = arith.constant 0 : index
      %c0_11 = arith.constant 0 : index
      %14 = vector.load %arg3[%c0_10, %c0_11] : memref<16x128xbf16, #tpu.memory_space<vmem>>, vector<16x128xbf16>
      %c0_12 = arith.constant 0 : index
      %c0_13 = arith.constant 0 : index
      %15 = vector.load %arg4[%c0_12, %c0_13] : memref<128x256xbf16, #tpu.memory_space<vmem>>, vector<128x256xbf16>
      %cst_14 = arith.constant dense<0.000000e+00> : vector<16x256xf32>
      %16 = tpu.matmul %14, %15, %cst_14 {dimension_numbers = #tpu.dot_dimension_numbers<[1], [0], [0], [1], [0, 0, 1, 1], [], []>} : vector<16x128xbf16>, vector<128x256xbf16>, vector<16x256xf32> -> vector<16x256xf32>
      %cst_15 = arith.constant dense<0.000000e+00> : vector<256xf32>
      %17 = vector.multi_reduction <add>, %16, %cst_15 [0] : vector<16x256xf32> to vector<256xf32>
      %18 = vector.shape_cast %17 : vector<256xf32> to vector<1x256xf32>
      %19 = arith.mulf %16, %16 : vector<16x256xf32>
      %cst_16 = arith.constant dense<0.000000e+00> : vector<256xf32>
      %20 = vector.multi_reduction <add>, %19, %cst_16 [0] : vector<16x256xf32> to vector<256xf32>
      %21 = vector.shape_cast %20 : vector<256xf32> to vector<1x256xf32>
      %cst_17 = arith.constant 0.0714285746 : f32
      %22 = vector.broadcast %cst_17 : f32 to vector<1x256xf32>
      %23 = arith.mulf %18, %22 : vector<1x256xf32>
      %cst_18 = arith.constant 0.0714285746 : f32
      %24 = vector.broadcast %cst_18 : f32 to vector<1x256xf32>
      %25 = arith.mulf %21, %24 : vector<1x256xf32>
      %26 = arith.mulf %23, %23 : vector<1x256xf32>
      %27 = arith.subf %25, %26 : vector<1x256xf32>
      %cst_19 = arith.constant 0.000000e+00 : f32
      %28 = vector.broadcast %cst_19 : f32 to vector<1x256xf32>
      %29 = arith.maximumf %27, %28 : vector<1x256xf32>
      %c0_20 = arith.constant 0 : index
      %c0_21 = arith.constant 0 : index
      %30 = vector.load %arg5[%c0_20, %c0_21] : memref<1x256xf32, #tpu.memory_space<vmem>>, vector<1x256xf32>
      %cst_22 = arith.constant 9.99999974E-6 : f32
      %31 = vector.broadcast %cst_22 : f32 to vector<1x256xf32>
      %32 = arith.addf %29, %31 : vector<1x256xf32>
      %33 = math.rsqrt %32 : vector<1x256xf32>
      %34 = arith.mulf %30, %33 : vector<1x256xf32>
      %35 = vector.broadcast %23 : vector<1x256xf32> to vector<16x256xf32>
      %36 = arith.subf %16, %35 : vector<16x256xf32>
      %37 = vector.broadcast %34 : vector<1x256xf32> to vector<16x256xf32>
      %38 = arith.mulf %36, %37 : vector<16x256xf32>
      %c0_23 = arith.constant 0 : index
      %c0_24 = arith.constant 0 : index
      %39 = vector.load %arg6[%c0_23, %c0_24] : memref<1x256xf32, #tpu.memory_space<vmem>>, vector<1x256xf32>
      %40 = vector.broadcast %39 : vector<1x256xf32> to vector<16x256xf32>
      %41 = arith.addf %38, %40 : vector<16x256xf32>
      %cst_25 = arith.constant 0.000000e+00 : f32
      %42 = vector.broadcast %cst_25 : f32 to vector<16x256xf32>
      %43 = arith.maximumf %41, %42 : vector<16x256xf32>
      %44 = arith.truncf %43 : vector<16x256xf32> to vector<16x256xbf16>
      %45 = arith.index_cast %arg2 : i32 to index
      %c0_26 = arith.constant 0 : index
      %c0_27 = arith.constant 0 : index
      %46 = vector.load %arg10[%45, %c0_26, %c0_27] : memref<2x16x256xbf16, #tpu.memory_space<vmem>>, vector<1x16x256xbf16>
      %47 = vector.shape_cast %46 : vector<1x16x256xbf16> to vector<16x256xbf16>
      %48 = vector.shape_cast %44 : vector<16x256xbf16> to vector<1x16x256xbf16>
      tpu.vector_store %arg10[%45, %c0_26, %c0_27], %48 {strides = array<i32>} : memref<2x16x256xbf16, #tpu.memory_space<vmem>>, vector<1x16x256xbf16>,
    } else {
    }
    %c0_i32_1 = arith.constant 0 : i32
    %3 = arith.cmpi eq, %arg2, %c0_i32_1 : i32
    %4 = arith.extui %3 : i1 to i32
    %c0_i32_2 = arith.constant 0 : i32
    %5 = arith.cmpi ne, %4, %c0_i32_2 : i32
    scf.if %5 {
      %c0_10 = arith.constant 0 : index
      %c0_11 = arith.constant 0 : index
      %14 = vector.load %arg8[%c0_10, %c0_11] : memref<1x256xf32, #tpu.memory_space<vmem>>, vector<1x256xf32>
      %15 = vector.shape_cast %14 : vector<1x256xf32> to vector<1x256xf32>
      %16 = vector.broadcast %15 : vector<1x256xf32> to vector<16x256xf32>
      %c0_12 = arith.constant 0 : index
      %c0_13 = arith.constant 0 : index
      %17 = vector.load %arg9[%c0_12, %c0_13] : memref<16x256xf32, #tpu.memory_space<vmem>>, vector<16x256xf32>
      tpu.vector_store %arg9[%c0_12, %c0_13], %16 {strides = array<i32>} : memref<16x256xf32, #tpu.memory_space<vmem>>, vector<16x256xf32>,
    } else {
    }
    %c0 = arith.constant 0 : index
    %c0_3 = arith.constant 0 : index
    %6 = vector.load %arg9[%c0, %c0_3] : memref<16x256xf32, #tpu.memory_space<vmem>>, vector<16x256xf32>
    %7 = arith.index_cast %arg2 : i32 to index
    %c0_4 = arith.constant 0 : index
    %c0_5 = arith.constant 0 : index
    %8 = vector.load %arg10[%7, %c0_4, %c0_5] : memref<2x16x256xbf16, #tpu.memory_space<vmem>>, vector<1x16x256xbf16>
    %9 = vector.shape_cast %8 : vector<1x16x256xbf16> to vector<16x256xbf16>
    %c0_6 = arith.constant 0 : index
    %c0_7 = arith.constant 0 : index
    %10 = vector.load %arg7[%c0_6, %c0_7] : memref<256x256xbf16, #tpu.memory_space<vmem>>, vector<256x256xbf16>
    %cst = arith.constant dense<0.000000e+00> : vector<16x256xf32>
    %11 = tpu.matmul %9, %10, %cst {dimension_numbers = #tpu.dot_dimension_numbers<[1], [0], [0], [1], [0, 0, 1, 1], [], []>} : vector<16x256xbf16>, vector<256x256xbf16>, vector<16x256xf32> -> vector<16x256xf32>
    %12 = arith.addf %6, %11 : vector<16x256xf32>
    %c0_8 = arith.constant 0 : index
    %c0_9 = arith.constant 0 : index
    %13 = vector.load %arg9[%c0_8, %c0_9] : memref<16x256xf32, #tpu.memory_space<vmem>>, vector<16x256xf32>
    tpu.vector_store %arg9[%c0_8, %c0_9], %12 {strides = array<i32>} : memref<16x256xf32, #tpu.memory_space<vmem>>, vector<16x256xf32>,
    return
  }
  func.func @transform_0(%arg0: i32, %arg1: i32, %arg2: i32) -> (i32, i32) {
    %c0_i32 = arith.constant 0 : i32
    %c0_i32_0 = arith.constant 0 : i32
    %c0_i32_1 = arith.constant 0 : i32
    return %c0_i32, %c0_i32_0 : i32, i32
  }
  func.func @transform_1(%arg0: i32, %arg1: i32, %arg2: i32) -> (i32, i32) {
    %c0_i32 = arith.constant 0 : i32
    %c0_i32_0 = arith.constant 0 : i32
    return %c0_i32, %arg2 : i32, i32
  }
  func.func @transform_2(%arg0: i32, %arg1: i32, %arg2: i32) -> (i32, i32) {
    %c0_i32 = arith.constant 0 : i32
    %c0_i32_0 = arith.constant 0 : i32
    return %c0_i32, %arg2 : i32, i32
  }
  func.func @transform_3(%arg0: i32, %arg1: i32, %arg2: i32) -> (i32, i32) {
    %c0_i32 = arith.constant 0 : i32
    %c0_i32_0 = arith.constant 0 : i32
    return %c0_i32, %arg2 : i32, i32
  }
  func.func @transform_4(%arg0: i32, %arg1: i32, %arg2: i32) -> (i32, i32) {
    %c2_i32 = arith.constant 2 : i32
    %0 = arith.muli %arg0, %c2_i32 : i32
    %1 = arith.addi %0, %arg1 : i32
    %c0_i32 = arith.constant 0 : i32
    return %arg2, %1 : i32, i32
  }
  func.func @transform_5(%arg0: i32, %arg1: i32, %arg2: i32) -> (i32, i32) {
    %c2_i32 = arith.constant 2 : i32
    %0 = arith.muli %arg0, %c2_i32 : i32
    %1 = arith.addi %0, %arg1 : i32
    %c0_i32 = arith.constant 0 : i32
    %c0_i32_0 = arith.constant 0 : i32
    return %c0_i32, %1 : i32, i32
  }
  func.func @transform_6(%arg0: i32, %arg1: i32, %arg2: i32) -> (i32, i32) {
    %c2_i32 = arith.constant 2 : i32
    %0 = arith.muli %arg0, %c2_i32 : i32
    %1 = arith.addi %0, %arg1 : i32
    %c0_i32 = arith.constant 0 : i32
    %c0_i32_0 = arith.constant 0 : i32
    return %c0_i32, %1 : i32, i32
  }
}

</mosaic_0001>

<llo_original>
// kernel: tpu_custom_call.1
$region0: #{tpu_custom_call.1}
  #allocation0 [shape = 'u32[]', space=smem, size = 0x4, offset = 0x4, fixed_abs, tag = 'smem constant byte address 0x4 - core index']
  #allocation1 [shape = 'u32[144,128]{1,0:T(1,128)}', space=vmem, size = 0x12000, scoped, tag = 'internal scratch']
  #allocation2 [shape = 'bf16[2,16,256]{2,1,0:T(16,128)(2,1)}', space=vmem, size = 0x4000, scoped, tag = 'scratch operand']
  %s0 = inlined_call_operand.hbm [shape: bf16[16,128], index: 0, kind: input, shape index: {}]
  %s1 = inlined_call_operand.hbm [shape: bf16[128,512], index: 1, kind: input, shape index: {}]
  %s2 = inlined_call_operand.vmem [shape: f32[1,512], index: 2, kind: input, shape index: {}]
  %s3 = inlined_call_operand.vmem [shape: f32[1,512], index: 3, kind: input, shape index: {}]
  %s4 = inlined_call_operand.hbm [shape: bf16[512,512], index: 4, kind: input, shape index: {}]
  %s5 = inlined_call_operand.vmem [shape: f32[1,512], index: 5, kind: input, shape index: {}]
  %s6 = inlined_call_operand.hbm [shape: f32[16,512], index: 6, kind: output, shape index: {}]
  %s7 = sld [smem:[#allocation0]]
  $region77: #{tpu_custom_call.1} parent=0
    _
  %s9 = ssub.s32 1, %s7
  %s10 = scalar_select 0, %s9, %s7
  $region1: #{tpu_custom_call.1} parent=0
    #allocation3 [shape = 'u8[4096]{0}', space=vmem, size = 0x1000, scoped, tag = 'input window, operand 0, single buffered']
    #allocation4 [shape = 's32[2]{0}', space=sflag, size = 0x8, scoped, tag = 'scoped memory for tpu_custom_call.1']
    #allocation5 [shape = 's32[2]{0}', space=sflag, size = 0x8, scoped, tag = 'scoped memory for tpu_custom_call.1']
    #allocation6 [shape = 'u8[131072]{0}', space=vmem, size = 0x20000, scoped, tag = 'input window, operand 1']
    #allocation7 [shape = 's32[2]{0}', space=sflag, size = 0x8, scoped, tag = 'scoped memory for tpu_custom_call.1']
    #allocation8 [shape = 'u8[262144]{0}', space=vmem, size = 0x40000, scoped, tag = 'input window, operand 4']
    #allocation9 [shape = 'u8[32768]{0}', space=vmem, size = 0x8000, scoped, tag = 'output window, operand 0']
    %11 = vsyncpa [#allocation4], 0
    %12 = vsyncpa [#allocation7], 0
    %s13 = scalar_lea.sflag [#allocation7], 1
    %14 = vsyncpa %s13, 0
    %15 = vsyncpa [#allocation5], 0
    %s16 = scalar_lea.sflag [#allocation5], 1
    %17 = vsyncpa %s16, 0
    loop: start=0, step=1, limit=6
    $region2: #{tpu_custom_call.1} parent=1 // loop_pre_header
      _
    $region3: #{tpu_custom_call.1} parent=1 // loop_header
      %s19 = sphi 0, %s23
      %p20 = scmp.ge.s32.totalorder %s19, 6
      %s26 = sphi 0, %s45
      %s27 = sphi 0, %s41
      %s28 = sphi 0, %s37
      %s29 = sphi 0, %s26
      %s30 = sphi 0, %s27
      %s31 = sphi 0, %s28
      %s32 = sphi 0, %s29
      %s33 = sphi 0, %s30
      %s34 = sphi 0, %s31
      %s46 = sphi 0, %s46
      %s48 = sphi 0, %s46
      %s49 = sphi 0, %s48
      %s63 = sphi 0, %s49
      %s69 = sphi 0, %s71
      %s72 = sphi 0, %s69
      %s73 = sphi 0, %s72
      %s89 = sphi 0, %s73
      %s95 = sphi 0, %s97
      %s98 = sphi 0, %s95
      %s99 = sphi 0, %s98
      %s115 = sphi 0, %s99
      %s121 = sphi 0, %s123
      %s124 = sphi 0, %s121
      %s125 = sphi 0, %s124
      %s141 = sphi 0, %s125
      %s153 = sphi 0, %s155
      %s156 = sphi 0, %s153
      %s157 = sphi 0, %s156
      %s173 = sphi 0, %s157
      %s183 = sphi 0, %s185
      %s186 = sphi 0, %s183
      %s187 = sphi 0, %s186
      %s203 = sphi 0, %s187
      %s213 = sphi 0, %s215
      %s216 = sphi 0, %s213
      %s217 = sphi 0, %s216
      %s233 = sphi 0, %s217
    $region4: #{tpu_custom_call.1} parent=1 // loop_header_branch
      %22 = sbr.rel (%p20) target = $region8
    $region5: #{tpu_custom_call.1} parent=1 // loop_body
      %s24 = ssub.s32 %s19, 1
      %s25 = ssub.s32 %s19, 2
      %s35 = sadd.s32 1, %s28
      %p36 = scmp.ge.s32.totalorder %s35, 2
      %s37 = scalar_select %p36, 0, %s35
      %s38 = sadd.s32 1, %s27
      %s39 = scalar_select %p36, %s38, %s27
      %p40 = scmp.ge.s32.totalorder %s39, 2
      %s41 = scalar_select %p40, 0, %s39
      %s42 = sadd.s32 1, %s26
      %s43 = scalar_select %p40, %s42, %s26
      %p44 = scmp.ge.s32.totalorder %s43, 1
      %s45 = scalar_select %p44, 0, %s43
      %s47 = sadd.s32 %s46, 1
      %p50 = scmp.eq.s32.totalorder %s19, 3
      %p51 = scmp.ne.s32.totalorder %s46, %s48
      %p52 = scmp.eq.s32.totalorder %s19, 0
      %p53 = por %p51, %p52
      %p54 = scmp.ne.s32.totalorder %s46, %s48
      %p55 = scmp.eq.s32.totalorder %s24, 3
      %p56 = por %p54, %p55
      %p57 = scmp.ne.s32.totalorder %s48, %s49
      %p58 = scmp.eq.s32.totalorder %s24, 0
      %p59 = por %p57, %p58
      %p60 = scmp.ne.s32.totalorder %s48, %s49
      %p61 = scmp.eq.s32.totalorder %s25, 3
      %p62 = por %p60, %p61
      %p64 = scmp.ne.s32.totalorder %s49, %s63
      %p65 = scmp.eq.s32.totalorder %s25, 0
      %p66 = por %p64, %p65
      %s67 = ssub.s32 %s28, %s37
      %p68 = scmp.eq.s32.totalorder %s67, 0
      %s70 = sadd.s32 %s69, 1
      %s71 = scalar_select %p68, %s69, %s70
      %p74 = pneg %p68
      %p75 = scmp.eq.s32.totalorder %s19, 3
      %p76 = por %p74, %p75
      %p77 = scmp.ne.s32.totalorder %s69, %s72
      %p78 = scmp.eq.s32.totalorder %s19, 0
      %p79 = por %p77, %p78
      %p80 = scmp.ne.s32.totalorder %s69, %s72
      %p81 = scmp.eq.s32.totalorder %s24, 3
      %p82 = por %p80, %p81
      %p83 = scmp.ne.s32.totalorder %s72, %s73
      %p84 = scmp.eq.s32.totalorder %s24, 0
      %p85 = por %p83, %p84
      %p86 = scmp.ne.s32.totalorder %s72, %s73
      %p87 = scmp.eq.s32.totalorder %s25, 3
      %p88 = por %p86, %p87
      %p90 = scmp.ne.s32.totalorder %s73, %s89
      %p91 = scmp.eq.s32.totalorder %s25, 0
      %p92 = por %p90, %p91
      %s93 = ssub.s32 %s28, %s37
      %p94 = scmp.eq.s32.totalorder %s93, 0
      %s96 = sadd.s32 %s95, 1
      %s97 = scalar_select %p94, %s95, %s96
      %p100 = pneg %p94
      %p101 = scmp.eq.s32.totalorder %s19, 3
      %p102 = por %p100, %p101
      %p103 = scmp.ne.s32.totalorder %s95, %s98
      %p104 = scmp.eq.s32.totalorder %s19, 0
      %p105 = por %p103, %p104
      %p106 = scmp.ne.s32.totalorder %s95, %s98
      %p107 = scmp.eq.s32.totalorder %s24, 3
      %p108 = por %p106, %p107
      %p109 = scmp.ne.s32.totalorder %s98, %s99
      %p110 = scmp.eq.s32.totalorder %s24, 0
      %p111 = por %p109, %p110
      %p112 = scmp.ne.s32.totalorder %s98, %s99
      %p113 = scmp.eq.s32.totalorder %s25, 3
      %p114 = por %p112, %p113
      %p116 = scmp.ne.s32.totalorder %s99, %s115
      %p117 = scmp.eq.s32.totalorder %s25, 0
      %p118 = por %p116, %p117
      %s119 = ssub.s32 %s28, %s37
      %p120 = scmp.eq.s32.totalorder %s119, 0
      %s122 = sadd.s32 %s121, 1
      %s123 = scalar_select %p120, %s121, %s122
      %p126 = pneg %p120
      %p127 = scmp.eq.s32.totalorder %s19, 3
      %p128 = por %p126, %p127
      %p129 = scmp.ne.s32.totalorder %s121, %s124
      %p130 = scmp.eq.s32.totalorder %s19, 0
      %p131 = por %p129, %p130
      %p132 = scmp.ne.s32.totalorder %s121, %s124
      %p133 = scmp.eq.s32.totalorder %s24, 3
      %p134 = por %p132, %p133
      %p135 = scmp.ne.s32.totalorder %s124, %s125
      %p136 = scmp.eq.s32.totalorder %s24, 0
      %p137 = por %p135, %p136
      %p138 = scmp.ne.s32.totalorder %s124, %s125
      %p139 = scmp.eq.s32.totalorder %s25, 3
      %p140 = por %p138, %p139
      %p142 = scmp.ne.s32.totalorder %s125, %s141
      %p143 = scmp.eq.s32.totalorder %s25, 0
      %p144 = por %p142, %p143
      %s145 = smul.u32 %s26, 2
      %s146 = sadd.s32 %s145, %s27
      %s147 = smul.u32 %s45, 2
      %s148 = sadd.s32 %s147, %s41
      %s149 = ssub.s32 %s28, %s37
      %s150 = ssub.s32 %s146, %s148
      %s151 = sor.u32 %s149, %s150
      %p152 = scmp.eq.s32.totalorder %s151, 0
      %s154 = sadd.s32 %s153, 1
      %s155 = scalar_select %p152, %s153, %s154
      %p158 = pneg %p152
      %p159 = scmp.eq.s32.totalorder %s19, 3
      %p160 = por %p158, %p159
      %p161 = scmp.ne.s32.totalorder %s153, %s156
      %p162 = scmp.eq.s32.totalorder %s19, 0
      %p163 = por %p161, %p162
      %p164 = scmp.ne.s32.totalorder %s153, %s156
      %p165 = scmp.eq.s32.totalorder %s24, 3
      %p166 = por %p164, %p165
      %p167 = scmp.ne.s32.totalorder %s156, %s157
      %p168 = scmp.eq.s32.totalorder %s24, 0
      %p169 = por %p167, %p168
      %p170 = scmp.ne.s32.totalorder %s156, %s157
      %p171 = scmp.eq.s32.totalorder %s25, 3
      %p172 = por %p170, %p171
      %p174 = scmp.ne.s32.totalorder %s157, %s173
      %p175 = scmp.eq.s32.totalorder %s25, 0
      %p176 = por %p174, %p175
      %s177 = smul.u32 %s26, 2
      %s178 = sadd.s32 %s177, %s27
      %s179 = smul.u32 %s45, 2
      %s180 = sadd.s32 %s179, %s41
      %s181 = ssub.s32 %s178, %s180
      %p182 = scmp.eq.s32.totalorder %s181, 0
      %s184 = sadd.s32 %s183, 1
      %s185 = scalar_select %p182, %s183, %s184
      %p188 = pneg %p182
      %p189 = scmp.eq.s32.totalorder %s19, 3
      %p190 = por %p188, %p189
      %p191 = scmp.ne.s32.totalorder %s183, %s186
      %p192 = scmp.eq.s32.totalorder %s19, 0
      %p193 = por %p191, %p192
      %p194 = scmp.ne.s32.totalorder %s183, %s186
      %p195 = scmp.eq.s32.totalorder %s24, 3
      %p196 = por %p194, %p195
      %p197 = scmp.ne.s32.totalorder %s186, %s187
      %p198 = scmp.eq.s32.totalorder %s24, 0
      %p199 = por %p197, %p198
      %p200 = scmp.ne.s32.totalorder %s186, %s187
      %p201 = scmp.eq.s32.totalorder %s25, 3
      %p202 = por %p200, %p201
      %p204 = scmp.ne.s32.totalorder %s187, %s203
      %p205 = scmp.eq.s32.totalorder %s25, 0
      %p206 = por %p204, %p205
      %s207 = smul.u32 %s26, 2
      %s208 = sadd.s32 %s207, %s27
      %s209 = smul.u32 %s45, 2
      %s210 = sadd.s32 %s209, %s41
      %s211 = ssub.s32 %s208, %s210
      %p212 = scmp.eq.s32.totalorder %s211, 0
      %s214 = sadd.s32 %s213, 1
      %s215 = scalar_select %p212, %s213, %s214
      %p218 = pneg %p212
      %p219 = scmp.eq.s32.totalorder %s19, 3
      %p220 = por %p218, %p219
      %p221 = scmp.ne.s32.totalorder %s213, %s216
      %p222 = scmp.eq.s32.totalorder %s19, 0
      %p223 = por %p221, %p222
      %p224 = scmp.ne.s32.totalorder %s213, %s216
      %p225 = scmp.eq.s32.totalorder %s24, 3
      %p226 = por %p224, %p225
      %p227 = scmp.ne.s32.totalorder %s216, %s217
      %p228 = scmp.eq.s32.totalorder %s24, 0
      %p229 = por %p227, %p228
      %p230 = scmp.ne.s32.totalorder %s216, %s217
      %p231 = scmp.eq.s32.totalorder %s25, 3
      %p232 = por %p230, %p231
      %p234 = scmp.ne.s32.totalorder %s217, %s233
      %p235 = scmp.eq.s32.totalorder %s25, 0
      %p236 = por %p234, %p235
      %p237 = scmp.le.s32.totalorder 1, %s19
      %p238 = scmp.lt.s32.totalorder %s19, 5
      %p239 = pnand %p237, %p238
      %p240 = pneg %p239
      // Predicated region
      $region9: #{tpu_custom_call.1} parent=5 // pred_check
        _
      $region10: #{tpu_custom_call.1} parent=5 // pred_check_branch
        %242 = sbr.rel (%p239) target = $region12
      $region11: #{tpu_custom_call.1} parent=5 // pred_region
        %s243 = ssub.s32 %s19, 1
        // Predicated region
        $region13: #{tpu_custom_call.1} parent=11 // pred_check
          %p244 = pneg %p59
        $region14: #{tpu_custom_call.1} parent=11 // pred_check_branch
          %246 = sbr.rel (%p244) target = $region16
        $region15: #{tpu_custom_call.1} parent=11 // pred_region
          %s248 = ssub.s32 128, 128
          %249 = vsyncadd [#allocation4], %s248
          %s250 = sshll.u32 [#allocation3], 4
          %s251 = int_to_ptr.vmem [resolvable:$true] %s250
          %256 = dma.hbm_to_vmem [thread:$0]  %s0, 128, %s251, [#allocation4], 64, 64, 4
        $region16: #{tpu_custom_call.1} parent=11 // pred_fallthru
          _
      $region12: #{tpu_custom_call.1} parent=5 // pred_fallthru
        _
      %p257 = scmp.lt.s32.totalorder %s19, 4
      // Predicated region
      $region17: #{tpu_custom_call.1} parent=5 // pred_check
        %p258 = pneg %p257
      $region18: #{tpu_custom_call.1} parent=5 // pred_check_branch
        %260 = sbr.rel (%p258) target = $region20
      $region19: #{tpu_custom_call.1} parent=5 // pred_region
        // Predicated region
        $region21: #{tpu_custom_call.1} parent=19 // pred_check
          %p261 = pneg %p79
        $region22: #{tpu_custom_call.1} parent=19 // pred_check_branch
          %263 = sbr.rel (%p261) target = $region24
        $region23: #{tpu_custom_call.1} parent=19 // pred_region
          %s264 = sand.u32 %s19, 1
          %s265 = scalar_lea.sflag [#allocation7], %s264
          %s266 = sand.u32 %s69, 1
          %s267 = smul.addr %s266, 128
          %s268 = scalar_lea.vmem [#allocation6], %s267
          %s269 = smul.u32 2, %s28
          %s271 = ssub.s32 2048, 2048
          %272 = vsyncadd %s265, %s271
          %s273 = smul.addr %s269, 64
          %s274 = scalar_lea.hbm %s1, %s273
          %s275 = sshll.u32 %s268, 4
          %s276 = int_to_ptr.vmem [resolvable:$true] %s275
          %281 = dma.hbm_to_vmem [thread:$0]  %s274, 2048, %s276, %s265, 256, 128, 8
        $region24: #{tpu_custom_call.1} parent=19 // pred_fallthru
          _
        // Predicated region
        $region25: #{tpu_custom_call.1} parent=19 // pred_check
          %p282 = pneg %p105
        $region26: #{tpu_custom_call.1} parent=19 // pred_check_branch
          %284 = sbr.rel (%p282) target = $region28
        $region27: #{tpu_custom_call.1} parent=19 // pred_region
          %s285 = smul.u32 2, %s28
          %p286 = scmp.lt.s32.totalorder %s285, 3
          %s287 = scalar_select %p286, %s285, 3
          %s288 = scalar_lea.vmem %s2, %s287
          %s289 = smul.u32 2, %s28
        $region28: #{tpu_custom_call.1} parent=19 // pred_fallthru
          _
        // Predicated region
        $region29: #{tpu_custom_call.1} parent=19 // pred_check
          %p290 = pneg %p131
        $region30: #{tpu_custom_call.1} parent=19 // pred_check_branch
          %292 = sbr.rel (%p290) target = $region32
        $region31: #{tpu_custom_call.1} parent=19 // pred_region
          %s293 = smul.u32 2, %s28
          %p294 = scmp.lt.s32.totalorder %s293, 3
          %s295 = scalar_select %p294, %s293, 3
          %s296 = scalar_lea.vmem %s3, %s295
          %s297 = smul.u32 2, %s28
        $region32: #{tpu_custom_call.1} parent=19 // pred_fallthru
          _
        // Predicated region
        $region33: #{tpu_custom_call.1} parent=19 // pred_check
          %p298 = pneg %p163
        $region34: #{tpu_custom_call.1} parent=19 // pred_check_branch
          %300 = sbr.rel (%p298) target = $region36
        $region35: #{tpu_custom_call.1} parent=19 // pred_region
          %s301 = sand.u32 %s19, 1
          %s302 = scalar_lea.sflag [#allocation7], %s301
          %s303 = sand.u32 %s153, 1
          %s304 = smul.addr %s303, 256
          %s305 = scalar_lea.vmem [#allocation8], %s304
          %s306 = smul.u32 %s26, 2
          %s307 = sadd.s32 %s306, %s27
          %s308 = smul.u32 32, %s28
          %s309 = smul.u32 2, %s307
          %s311 = ssub.s32 4096, 4096
          %312 = vsyncadd %s302, %s311
          %s313 = smul.addr %s308, 4
          %s314 = sadd.s32 %s309, %s313
          %s315 = smul.addr %s314, 64
          %s316 = scalar_lea.hbm %s4, %s315
          %s317 = sshll.u32 %s305, 4
          %s318 = int_to_ptr.vmem [resolvable:$true] %s317
          %323 = dma.hbm_to_vmem [thread:$0]  %s316, 4096, %s318, %s302, 256, 128, 8
        $region36: #{tpu_custom_call.1} parent=19 // pred_fallthru
          _
        // Predicated region
        $region37: #{tpu_custom_call.1} parent=19 // pred_check
          %p324 = pneg %p193
        $region38: #{tpu_custom_call.1} parent=19 // pred_check_branch
          %326 = sbr.rel (%p324) target = $region40
        $region39: #{tpu_custom_call.1} parent=19 // pred_region
          %s327 = smul.u32 %s26, 2
          %s328 = sadd.s32 %s327, %s27
          %s329 = smul.u32 2, %s328
          %p330 = scmp.lt.s32.totalorder %s329, 3
          %s331 = scalar_select %p330, %s329, 3
          %s332 = scalar_lea.vmem %s5, %s331
          %s333 = smul.u32 %s26, 2
          %s334 = sadd.s32 %s333, %s27
          %s335 = smul.u32 2, %s334
        $region40: #{tpu_custom_call.1} parent=19 // pred_fallthru
          _
      $region20: #{tpu_custom_call.1} parent=5 // pred_fallthru
        _
      %p336 = scmp.le.s32.totalorder 1, %s19
      %p337 = scmp.lt.s32.totalorder %s19, 5
      %p338 = pnand %p336, %p337
      %p339 = pneg %p338
      // Predicated region
      $region41: #{tpu_custom_call.1} parent=5 // pred_check
        _
      $region42: #{tpu_custom_call.1} parent=5 // pred_check_branch
        %341 = sbr.rel (%p338) target = $region44
      $region43: #{tpu_custom_call.1} parent=5 // pred_region
        %s342 = ssub.s32 %s19, 1
        // Predicated region
        $region45: #{tpu_custom_call.1} parent=43 // pred_check
          %p343 = pneg %p59
        $region46: #{tpu_custom_call.1} parent=43 // pred_check_branch
          %345 = sbr.rel (%p343) target = $region48
        $region47: #{tpu_custom_call.1} parent=43 // pred_region
          %346 = dma.done [#allocation4], 128
        $region48: #{tpu_custom_call.1} parent=43 // pred_fallthru
          _
        %s347 = sand.u32 %s24, 1
        %s348 = scalar_lea.sflag [#allocation7], %s347
        %s349 = sand.u32 %s72, 1
        %s350 = smul.addr %s349, 128
        %s351 = scalar_lea.vmem [#allocation6], %s350
        // Predicated region
        $region49: #{tpu_custom_call.1} parent=43 // pred_check
          %p352 = pneg %p85
        $region50: #{tpu_custom_call.1} parent=43 // pred_check_branch
          %354 = sbr.rel (%p352) target = $region52
        $region51: #{tpu_custom_call.1} parent=43 // pred_region
          %355 = dma.done %s348, 2048
        $region52: #{tpu_custom_call.1} parent=43 // pred_fallthru
          _
        %s356 = sand.u32 %s24, 1
        %s357 = scalar_lea.sflag [#allocation7], %s356
        %s358 = sand.u32 %s156, 1
        %s359 = smul.addr %s358, 256
        %s360 = scalar_lea.vmem [#allocation8], %s359
        // Predicated region
        $region53: #{tpu_custom_call.1} parent=43 // pred_check
          %p361 = pneg %p169
        $region54: #{tpu_custom_call.1} parent=43 // pred_check_branch
          %363 = sbr.rel (%p361) target = $region56
        $region55: #{tpu_custom_call.1} parent=43 // pred_region
          %364 = dma.done %s357, 4096
        $region56: #{tpu_custom_call.1} parent=43 // pred_fallthru
          _
        %p365 = pneg %p59
        %p366 = pneg %p56
        %s367 = sand.u32 %s24, 1
        %s368 = scalar_lea.sflag [#allocation7], %s367
        %s369 = sand.u32 %s72, 1
        %s370 = smul.addr %s369, 128
        %s371 = scalar_lea.vmem [#allocation6], %s370
        %p372 = pneg %p85
        %p373 = pneg %p82
        %s374 = smul.u32 2, %s31
        %p375 = scmp.lt.s32.totalorder %s374, 3
        %s376 = scalar_select %p375, %s374, 3
        %s377 = scalar_lea.vmem %s2, %s376
        %p378 = pneg %p111
        %p379 = pneg %p108
        %s380 = smul.u32 2, %s31
        %p381 = scmp.lt.s32.totalorder %s380, 3
        %s382 = scalar_select %p381, %s380, 3
        %s383 = scalar_lea.vmem %s3, %s382
        %p384 = pneg %p137
        %p385 = pneg %p134
        %s386 = sand.u32 %s24, 1
        %s387 = scalar_lea.sflag [#allocation7], %s386
        %s388 = sand.u32 %s156, 1
        %s389 = smul.addr %s388, 256
        %s390 = scalar_lea.vmem [#allocation8], %s389
        %p391 = pneg %p169
        %p392 = pneg %p166
        %s393 = smul.u32 %s29, 2
        %s394 = sadd.s32 %s393, %s30
        %s395 = smul.u32 2, %s394
        %p396 = scmp.lt.s32.totalorder %s395, 3
        %s397 = scalar_select %p396, %s395, 3
        %s398 = scalar_lea.vmem %s5, %s397
        %p399 = pneg %p199
        %p400 = pneg %p196
        %p401 = pneg %p229
        %p402 = pneg %p226
        %s403 = sand.u32 %s216, 1
        %s404 = scalar_lea.sflag [#allocation5], %s403
        %s405 = sand.u32 %s216, 1
        %s406 = smul.addr %s405, 32
        %s407 = scalar_lea.vmem [#allocation9], %s406
        %s408 = smul.u32 2, %s31
        %s409 = smul.u32 2, %s31
        %p410 = scmp.lt.s32.totalorder %s409, 3
        %s411 = scalar_select %p410, %s409, 3
        %s412 = scalar_lea.vmem %s2, %s411
        %s413 = smul.u32 2, %s31
        %s414 = smul.u32 2, %s31
        %p415 = scmp.lt.s32.totalorder %s414, 3
        %s416 = scalar_select %p415, %s414, 3
        %s417 = scalar_lea.vmem %s3, %s416
        %s418 = smul.u32 2, %s31
        %s419 = smul.u32 %s29, 2
        %s420 = sadd.s32 %s419, %s30
        %s421 = smul.u32 32, %s31
        %s422 = smul.u32 2, %s420
        %s423 = smul.u32 %s29, 2
        %s424 = sadd.s32 %s423, %s30
        %s425 = smul.u32 2, %s424
        %p426 = scmp.lt.s32.totalorder %s425, 3
        %s427 = scalar_select %p426, %s425, 3
        %s428 = scalar_lea.vmem %s5, %s427
        %s429 = smul.u32 %s29, 2
        %s430 = sadd.s32 %s429, %s30
        %s431 = smul.u32 2, %s430
        %s432 = smul.u32 %s29, 2
        %s433 = sadd.s32 %s432, %s30
        %s434 = smul.u32 2, %s433
        %p436 = scmp.eq.s32.totalorder %s30, 0
        // Predicated region
        $region57: #{tpu_custom_call.1} parent=43 // pred_check
          %p437 = pneg %p436
        $region58: #{tpu_custom_call.1} parent=43 // pred_check_branch
          %439 = sbr.rel (%p437) target = $region60
        $region59: #{tpu_custom_call.1} parent=43 // pred_region
          %v440 = vld [vmem:[#allocation3] sm:$0xf]
          %v441 = vld [vmem:[#allocation3 + $0x4] sm:$0xf]
          %v442 = vld [vmem:[%s351] sm:$0xff]
          %v443 = vld [vmem:[%s351 + $0x8] sm:$0xff]
          %v444 = vld [vmem:[%s351 + $0x10] sm:$0xff]
          %v445 = vld [vmem:[%s351 + $0x18] sm:$0xff]
          %v446 = vld [vmem:[%s351 + $0x20] sm:$0xff]
          %v447 = vld [vmem:[%s351 + $0x28] sm:$0xff]
          %v448 = vld [vmem:[%s351 + $0x30] sm:$0xff]
          %v449 = vld [vmem:[%s351 + $0x38] sm:$0xff]
          %v450 = vld [vmem:[%s351 + $0x40] sm:$0xff]
          %v451 = vld [vmem:[%s351 + $0x48] sm:$0xff]
          %v452 = vld [vmem:[%s351 + $0x50] sm:$0xff]
          %v453 = vld [vmem:[%s351 + $0x58] sm:$0xff]
          %v454 = vld [vmem:[%s351 + $0x60] sm:$0xff]
          %v455 = vld [vmem:[%s351 + $0x68] sm:$0xff]
          %v456 = vld [vmem:[%s351 + $0x70] sm:$0xff]
          %v457 = vld [vmem:[%s351 + $0x78] sm:$0xff]
          %v460 = vunpack.c.l.b16 %v440
          %v461 = vunpack.c.l.b16 %v441
          %v462 = vpack.c.b16 %v461, %v460
          %v480 = vunpack.c.l.b16 %v442
          %v481 = vunpack.c.h.b16 %v442
          %v482 = vunpack.c.l.b16 %v443
          %v483 = vunpack.c.h.b16 %v443
          %v484 = vunpack.c.l.b16 %v444
          %v485 = vunpack.c.h.b16 %v444
          %v486 = vunpack.c.l.b16 %v445
          %v487 = vunpack.c.h.b16 %v445
          %v488 = vunpack.c.l.b16 %v446
          %v489 = vunpack.c.h.b16 %v446
          %v490 = vunpack.c.l.b16 %v447
          %v491 = vunpack.c.h.b16 %v447
          %v492 = vunpack.c.l.b16 %v448
          %v493 = vunpack.c.h.b16 %v448
          %v494 = vunpack.c.l.b16 %v449
          %v495 = vunpack.c.h.b16 %v449
          %v496 = vunpack.c.l.b16 %v450
          %v497 = vunpack.c.h.b16 %v450
          %v498 = vunpack.c.l.b16 %v451
          %v499 = vunpack.c.h.b16 %v451
          %v500 = vunpack.c.l.b16 %v452
          %v501 = vunpack.c.h.b16 %v452
          %v502 = vunpack.c.l.b16 %v453
          %v503 = vunpack.c.h.b16 %v453
          %v504 = vunpack.c.l.b16 %v454
          %v505 = vunpack.c.h.b16 %v454
          %v506 = vunpack.c.l.b16 %v455
          %v507 = vunpack.c.h.b16 %v455
          %v508 = vunpack.c.l.b16 %v456
          %v509 = vunpack.c.h.b16 %v456
          %v510 = vunpack.c.l.b16 %v457
          %v511 = vunpack.c.h.b16 %v457
          %v512 = vpack.c.b16 %v482, %v480
          %v513 = vpack.c.b16 %v483, %v481
          %v514 = vpack.c.b16 %v486, %v484
          %v515 = vpack.c.b16 %v487, %v485
          %v516 = vpack.c.b16 %v490, %v488
          %v517 = vpack.c.b16 %v491, %v489
          %v518 = vpack.c.b16 %v494, %v492
          %v519 = vpack.c.b16 %v495, %v493
          %v520 = vpack.c.b16 %v498, %v496
          %v521 = vpack.c.b16 %v499, %v497
          %v522 = vpack.c.b16 %v502, %v500
          %v523 = vpack.c.b16 %v503, %v501
          %v524 = vpack.c.b16 %v506, %v504
          %v525 = vpack.c.b16 %v507, %v505
          %v526 = vpack.c.b16 %v510, %v508
          %v527 = vpack.c.b16 %v511, %v509
          %544 = vmatprep.subr.bf16.mxu0 %v513
          %545 = vmatpush1.bf16.msra.mxu0 %v512
          %546 = vmatprep.subr.bf16.mxu0 %v515
          %547 = vmatpush1.bf16.msra.mxu0 %v514
          %548 = vmatprep.subr.bf16.mxu0 %v517
          %549 = vmatpush1.bf16.msra.mxu0 %v516
          %550 = vmatprep.subr.bf16.mxu0 %v519
          %551 = vmatpush1.bf16.msra.mxu0 %v518
          %552 = vmatprep.subr.bf16.mxu0 %v521
          %553 = vmatpush1.bf16.msra.mxu0 %v520
          %554 = vmatprep.subr.bf16.mxu0 %v523
          %555 = vmatpush1.bf16.msra.mxu0 %v522
          %556 = vmatprep.subr.bf16.mxu0 %v525
          %557 = vmatpush1.bf16.msra.mxu0 %v524
          %558 = vmatprep.subr.bf16.mxu0 %v527
          %559 = vmatpush1.bf16.msra.mxu0 %v526
          %560 = vmatprep.subr.bf16.mxu0 0
          %561 = vmatpush1.bf16.msra.mxu0 0
          %562 = vmatprep.subr.bf16.mxu0 0
          %563 = vmatpush1.bf16.msra.mxu0 0
          %564 = vmatprep.subr.bf16.mxu0 0
          %565 = vmatpush1.bf16.msra.mxu0 0
          %566 = vmatprep.subr.bf16.mxu0 0
          %567 = vmatpush1.bf16.msra.mxu0 0
          %568 = vmatprep.subr.bf16.mxu0 0
          %569 = vmatpush1.bf16.msra.mxu0 0
          %570 = vmatprep.subr.bf16.mxu0 0
          %571 = vmatpush1.bf16.msra.mxu0 0
          %572 = vmatprep.subr.bf16.mxu0 0
          %573 = vmatpush1.bf16.msra.mxu0 0
          %574 = vmatprep.subr.bf16.mxu0 0
          %575 = vmatpush1.bf16.msra.mxu0 0
          %576 = vmatprep.mubr.bf16.mxu0 0
          %577 = vmatmul.mubr.bf16.gmra.mrb[0].mxu0 %v462
          %v578 = vpop.f32.mrb[0].mxu0
          %v579 = vadd.f32 0.0, %v578
          %v580 = vpop.f32.mrb[0].mxu0
          %v581 = vadd.f32 0.0, %v580
          %v582 = vpop.f32.mrb[0].mxu0
          %v583 = vadd.f32 0.0, %v582
          %v584 = vpop.f32.mrb[0].mxu0
          %v585 = vadd.f32 0.0, %v584
          %586 = vdwg.mxu0
          %v587 = vadd.f32 %v579, %v583
          %v588 = vrot.slane %v587, 4
          %v589 = vadd.f32 %v587, %v588
          %v590 = vrot.slane %v589, 2
          %v591 = vadd.f32 %v589, %v590
          %v592 = vrot.slane %v591, 1
          %v593 = vadd.f32 %v591, %v592
          %v594 = vadd.f32 %v581, %v585
          %v595 = vrot.slane %v594, 4
          %v596 = vadd.f32 %v594, %v595
          %v597 = vrot.slane %v596, 2
          %v598 = vadd.f32 %v596, %v597
          %v599 = vrot.slane %v598, 1
          %v600 = vadd.f32 %v598, %v599
          %v601 = vmul.f32 %v579, %v579
          %v602 = vmul.f32 %v581, %v581
          %v603 = vmul.f32 %v583, %v583
          %v604 = vmul.f32 %v585, %v585
          %v605 = vadd.f32 %v601, %v603
          %v606 = vrot.slane %v605, 4
          %v607 = vadd.f32 %v605, %v606
          %v608 = vrot.slane %v607, 2
          %v609 = vadd.f32 %v607, %v608
          %v610 = vrot.slane %v609, 1
          %v611 = vadd.f32 %v609, %v610
          %v612 = vadd.f32 %v602, %v604
          %v613 = vrot.slane %v612, 4
          %v614 = vadd.f32 %v612, %v613
          %v615 = vrot.slane %v614, 2
          %v616 = vadd.f32 %v614, %v615
          %v617 = vrot.slane %v616, 1
          %v618 = vadd.f32 %v616, %v617
          %v619 = vmul.f32 %v593, 0.071428575
          %v620 = vmul.f32 %v600, 0.071428575
          %v621 = vmul.f32 %v611, 0.071428575
          %v622 = vmul.f32 %v618, 0.071428575
          %v623 = vmul.f32 %v619, %v619
          %v624 = vmul.f32 %v620, %v620
          %v625 = vsub.f32 %v621, %v623
          %v626 = vsub.f32 %v622, %v624
          %v627 = vmax.f32 %v625, 0.0
          %v628 = vmax.f32 %v626, 0.0
          %v629 = vld [vmem:[%s412] sm:$0x3]
          %v630 = vadd.f32 %v627, 1e-05
          %v631 = vadd.f32 %v628, 1e-05
          %v632 = vrsqrt.pop %v630
          %v633 = vrsqrt.pop %v631
          %v636 = vcombine.low %v632, %v633
          %v638 = vunpack.c.l.s4 1966171168
          %v639 = vunpack.c.0.s8 %v638
          %v640 = vlaneseq
          %v641 = vshrl.u32 %v640, 7
          %v642 = vsub.s32 %v639, %v641
          %v643 = vrot.slane %v636, %v642
          %v645 = vunpack.c.l.s4 1966171168
          %v646 = vunpack.c.0.s8 %v645
          %v647 = vlaneseq
          %v648 = vshrl.u32 %v647, 7
          %v649 = vsub.s32 %v646, %v648
          %v650 = vrot.slane %v643, %v649
          %v652 = vmul.f32 %v629, %v650
          %v653 = vsub.f32 %v579, %v619
          %v654 = vsub.f32 %v581, %v620
          %v655 = vsub.f32 %v583, %v619
          %v656 = vsub.f32 %v585, %v620
          %v658 = vlaneseq
          %v659 = vshrl.u32 %v658, 7
          %v660 = vsub.s32 0, %v659
          %v661 = vrot.slane %v652, %v660
          %v662 = vlaneseq
          %v663 = vshrl.u32 %v662, 7
          %v664 = vsub.s32 1, %v663
          %v665 = vrot.slane %v652, %v664
          %v668 = vmul.f32 %v653, %v661
          %v669 = vmul.f32 %v654, %v665
          %v670 = vmul.f32 %v655, %v661
          %v671 = vmul.f32 %v656, %v665
          %v672 = vld [vmem:[%s417] sm:$0x3]
          %v674 = vlaneseq
          %v675 = vshrl.u32 %v674, 7
          %v676 = vsub.s32 0, %v675
          %v677 = vrot.slane %v672, %v676
          %v678 = vlaneseq
          %v679 = vshrl.u32 %v678, 7
          %v680 = vsub.s32 1, %v679
          %v681 = vrot.slane %v672, %v680
          %v684 = vadd.f32 %v668, %v677
          %v685 = vadd.f32 %v669, %v681
          %v686 = vadd.f32 %v670, %v677
          %v687 = vadd.f32 %v671, %v681
          %v688 = vmax.f32 %v684, 0.0
          %v689 = vmax.f32 %v685, 0.0
          %v690 = vmax.f32 %v686, 0.0
          %v691 = vmax.f32 %v687, 0.0
          %v692 = vpack.c.bf16 %v690, %v688
          %v693 = vpack.c.bf16 %v691, %v689
          %s694 = smul.u32 %s31, 2
          %s695 = smul.addr %s694, 8
          %s696 = scalar_lea.vmem [#allocation2], %s695
          %697 = vst [vmem:[%s696] sm:$0xff] %v692
          %698 = vst [vmem:[%s696 + $0x8] sm:$0xff] %v693
        $region60: #{tpu_custom_call.1} parent=43 // pred_fallthru
          _
        %p699 = scmp.eq.s32.totalorder %s31, 0
        // Predicated region
        $region61: #{tpu_custom_call.1} parent=43 // pred_check
          %p700 = pneg %p699
        $region62: #{tpu_custom_call.1} parent=43 // pred_check_branch
          %702 = sbr.rel (%p700) target = $region64
        $region63: #{tpu_custom_call.1} parent=43 // pred_region
          %v703 = vld [vmem:[%s428] sm:$0x3]
          %v705 = vlaneseq
          %v706 = vshrl.u32 %v705, 7
          %v707 = vsub.s32 0, %v706
          %v708 = vrot.slane %v703, %v707
          %v709 = vlaneseq
          %v710 = vshrl.u32 %v709, 7
          %v711 = vsub.s32 1, %v710
          %v712 = vrot.slane %v703, %v711
          %715 = vst [vmem:[%s407] sm:$0xff] %v708
          %716 = vst [vmem:[%s407 + $0x8] sm:$0xff] %v712
          %717 = vst [vmem:[%s407 + $0x10] sm:$0xff] %v708
          %718 = vst [vmem:[%s407 + $0x18] sm:$0xff] %v712
        $region64: #{tpu_custom_call.1} parent=43 // pred_fallthru
          _
        %v719 = vld [vmem:[%s407] sm:$0xff]
        %v720 = vld [vmem:[%s407 + $0x8] sm:$0xff]
        %v721 = vld [vmem:[%s407 + $0x10] sm:$0xff]
        %v722 = vld [vmem:[%s407 + $0x18] sm:$0xff]
        %s723 = smul.u32 %s31, 2
        %s724 = smul.addr %s723, 8
        %s725 = scalar_lea.vmem [#allocation2], %s724
        %v726 = vld [vmem:[%s725] sm:$0xff]
        %v727 = vld [vmem:[%s725 + $0x8] sm:$0xff]
        %v728 = vld [vmem:[%s360] sm:$0xff]
        %v729 = vld [vmem:[%s360 + $0x8] sm:$0xff]
        %v730 = vld [vmem:[%s360 + $0x10] sm:$0xff]
        %v731 = vld [vmem:[%s360 + $0x18] sm:$0xff]
        %v732 = vld [vmem:[%s360 + $0x20] sm:$0xff]
        %v733 = vld [vmem:[%s360 + $0x28] sm:$0xff]
        %v734 = vld [vmem:[%s360 + $0x30] sm:$0xff]
        %v735 = vld [vmem:[%s360 + $0x38] sm:$0xff]
        %v736 = vld [vmem:[%s360 + $0x40] sm:$0xff]
        %v737 = vld [vmem:[%s360 + $0x48] sm:$0xff]
        %v738 = vld [vmem:[%s360 + $0x50] sm:$0xff]
        %v739 = vld [vmem:[%s360 + $0x58] sm:$0xff]
        %v740 = vld [vmem:[%s360 + $0x60] sm:$0xff]
        %v741 = vld [vmem:[%s360 + $0x68] sm:$0xff]
        %v742 = vld [vmem:[%s360 + $0x70] sm:$0xff]
        %v743 = vld [vmem:[%s360 + $0x78] sm:$0xff]
        %v744 = vld [vmem:[%s360 + $0x80] sm:$0xff]
        %v745 = vld [vmem:[%s360 + $0x88] sm:$0xff]
        %v746 = vld [vmem:[%s360 + $0x90] sm:$0xff]
        %v747 = vld [vmem:[%s360 + $0x98] sm:$0xff]
        %v748 = vld [vmem:[%s360 + $0xa0] sm:$0xff]
        %v749 = vld [vmem:[%s360 + $0xa8] sm:$0xff]
        %v750 = vld [vmem:[%s360 + $0xb0] sm:$0xff]
        %v751 = vld [vmem:[%s360 + $0xb8] sm:$0xff]
        %v752 = vld [vmem:[%s360 + $0xc0] sm:$0xff]
        %v753 = vld [vmem:[%s360 + $0xc8] sm:$0xff]
        %v754 = vld [vmem:[%s360 + $0xd0] sm:$0xff]
        %v755 = vld [vmem:[%s360 + $0xd8] sm:$0xff]
        %v756 = vld [vmem:[%s360 + $0xe0] sm:$0xff]
        %v757 = vld [vmem:[%s360 + $0xe8] sm:$0xff]
        %v758 = vld [vmem:[%s360 + $0xf0] sm:$0xff]
        %v759 = vld [vmem:[%s360 + $0xf8] sm:$0xff]
        %v792 = vunpack.c.l.b16 %v728
        %v793 = vunpack.c.h.b16 %v728
        %v794 = vunpack.c.l.b16 %v729
        %v795 = vunpack.c.h.b16 %v729
        %v796 = vunpack.c.l.b16 %v730
        %v797 = vunpack.c.h.b16 %v730
        %v798 = vunpack.c.l.b16 %v731
        %v799 = vunpack.c.h.b16 %v731
        %v800 = vunpack.c.l.b16 %v732
        %v801 = vunpack.c.h.b16 %v732
        %v802 = vunpack.c.l.b16 %v733
        %v803 = vunpack.c.h.b16 %v733
        %v804 = vunpack.c.l.b16 %v734
        %v805 = vunpack.c.h.b16 %v734
        %v806 = vunpack.c.l.b16 %v735
        %v807 = vunpack.c.h.b16 %v735
        %v808 = vunpack.c.l.b16 %v736
        %v809 = vunpack.c.h.b16 %v736
        %v810 = vunpack.c.l.b16 %v737
        %v811 = vunpack.c.h.b16 %v737
        %v812 = vunpack.c.l.b16 %v738
        %v813 = vunpack.c.h.b16 %v738
        %v814 = vunpack.c.l.b16 %v739
        %v815 = vunpack.c.h.b16 %v739
        %v816 = vunpack.c.l.b16 %v740
        %v817 = vunpack.c.h.b16 %v740
        %v818 = vunpack.c.l.b16 %v741
        %v819 = vunpack.c.h.b16 %v741
        %v820 = vunpack.c.l.b16 %v742
        %v821 = vunpack.c.h.b16 %v742
        %v822 = vunpack.c.l.b16 %v743
        %v823 = vunpack.c.h.b16 %v743
        %v824 = vunpack.c.l.b16 %v744
        %v825 = vunpack.c.h.b16 %v744
        %v826 = vunpack.c.l.b16 %v745
        %v827 = vunpack.c.h.b16 %v745
        %v828 = vunpack.c.l.b16 %v746
        %v829 = vunpack.c.h.b16 %v746
        %v830 = vunpack.c.l.b16 %v747
        %v831 = vunpack.c.h.b16 %v747
        %v832 = vunpack.c.l.b16 %v748
        %v833 = vunpack.c.h.b16 %v748
        %v834 = vunpack.c.l.b16 %v749
        %v835 = vunpack.c.h.b16 %v749
        %v836 = vunpack.c.l.b16 %v750
        %v837 = vunpack.c.h.b16 %v750
        %v838 = vunpack.c.l.b16 %v751
        %v839 = vunpack.c.h.b16 %v751
        %v840 = vunpack.c.l.b16 %v752
        %v841 = vunpack.c.h.b16 %v752
        %v842 = vunpack.c.l.b16 %v753
        %v843 = vunpack.c.h.b16 %v753
        %v844 = vunpack.c.l.b16 %v754
        %v845 = vunpack.c.h.b16 %v754
        %v846 = vunpack.c.l.b16 %v755
        %v847 = vunpack.c.h.b16 %v755
        %v848 = vunpack.c.l.b16 %v756
        %v849 = vunpack.c.h.b16 %v756
        %v850 = vunpack.c.l.b16 %v757
        %v851 = vunpack.c.h.b16 %v757
        %v852 = vunpack.c.l.b16 %v758
        %v853 = vunpack.c.h.b16 %v758
        %v854 = vunpack.c.l.b16 %v759
        %v855 = vunpack.c.h.b16 %v759
        %v856 = vpack.c.b16 %v794, %v792
        %v857 = vpack.c.b16 %v795, %v793
        %v858 = vpack.c.b16 %v798, %v796
        %v859 = vpack.c.b16 %v799, %v797
        %v860 = vpack.c.b16 %v802, %v800
        %v861 = vpack.c.b16 %v803, %v801
        %v862 = vpack.c.b16 %v806, %v804
        %v863 = vpack.c.b16 %v807, %v805
        %v864 = vpack.c.b16 %v810, %v808
        %v865 = vpack.c.b16 %v811, %v809
        %v866 = vpack.c.b16 %v814, %v812
        %v867 = vpack.c.b16 %v815, %v813
        %v868 = vpack.c.b16 %v818, %v816
        %v869 = vpack.c.b16 %v819, %v817
        %v870 = vpack.c.b16 %v822, %v820
        %v871 = vpack.c.b16 %v823, %v821
        %v872 = vpack.c.b16 %v826, %v824
        %v873 = vpack.c.b16 %v827, %v825
        %v874 = vpack.c.b16 %v830, %v828
        %v875 = vpack.c.b16 %v831, %v829
        %v876 = vpack.c.b16 %v834, %v832
        %v877 = vpack.c.b16 %v835, %v833
        %v878 = vpack.c.b16 %v838, %v836
        %v879 = vpack.c.b16 %v839, %v837
        %v880 = vpack.c.b16 %v842, %v840
        %v881 = vpack.c.b16 %v843, %v841
        %v882 = vpack.c.b16 %v846, %v844
        %v883 = vpack.c.b16 %v847, %v845
        %v884 = vpack.c.b16 %v850, %v848
        %v885 = vpack.c.b16 %v851, %v849
        %v886 = vpack.c.b16 %v854, %v852
        %v887 = vpack.c.b16 %v855, %v853
        %920 = vmatprep.subr.bf16.mxu0 %v857
        %921 = vmatpush1.bf16.msra.mxu0 %v856
        %922 = vmatprep.subr.bf16.mxu0 %v859
        %923 = vmatpush1.bf16.msra.mxu0 %v858
        %924 = vmatprep.subr.bf16.mxu0 %v861
        %925 = vmatpush1.bf16.msra.mxu0 %v860
        %926 = vmatprep.subr.bf16.mxu0 %v863
        %927 = vmatpush1.bf16.msra.mxu0 %v862
        %928 = vmatprep.subr.bf16.mxu0 %v865
        %929 = vmatpush1.bf16.msra.mxu0 %v864
        %930 = vmatprep.subr.bf16.mxu0 %v867
        %931 = vmatpush1.bf16.msra.mxu0 %v866
        %932 = vmatprep.subr.bf16.mxu0 %v869
        %933 = vmatpush1.bf16.msra.mxu0 %v868
        %934 = vmatprep.subr.bf16.mxu0 %v871
        %935 = vmatpush1.bf16.msra.mxu0 %v870
        %936 = vmatprep.subr.bf16.mxu0 %v873
        %937 = vmatpush1.bf16.msra.mxu0 %v872
        %938 = vmatprep.subr.bf16.mxu0 %v875
        %939 = vmatpush1.bf16.msra.mxu0 %v874
        %940 = vmatprep.subr.bf16.mxu0 %v877
        %941 = vmatpush1.bf16.msra.mxu0 %v876
        %942 = vmatprep.subr.bf16.mxu0 %v879
        %943 = vmatpush1.bf16.msra.mxu0 %v878
        %944 = vmatprep.subr.bf16.mxu0 %v881
        %945 = vmatpush1.bf16.msra.mxu0 %v880
        %946 = vmatprep.subr.bf16.mxu0 %v883
        %947 = vmatpush1.bf16.msra.mxu0 %v882
        %948 = vmatprep.subr.bf16.mxu0 %v885
        %949 = vmatpush1.bf16.msra.mxu0 %v884
        %950 = vmatprep.subr.bf16.mxu0 %v887
        %951 = vmatpush1.bf16.msra.mxu0 %v886
        %952 = vmatprep.mubr.bf16.mxu0 %v727
        %953 = vmatmul.mubr.bf16.gmra.mrb[0].mxu0 %v726
        %v954 = vpop.f32.mrb[0].mxu0
        %v955 = vadd.f32 0.0, %v954
        %v956 = vpop.f32.mrb[0].mxu0
        %v957 = vadd.f32 0.0, %v956
        %v958 = vpop.f32.mrb[0].mxu0
        %v959 = vadd.f32 0.0, %v958
        %v960 = vpop.f32.mrb[0].mxu0
        %v961 = vadd.f32 0.0, %v960
        %962 = vdwg.mxu0
        %v963 = vadd.f32 %v719, %v955
        %v964 = vadd.f32 %v720, %v957
        %v965 = vadd.f32 %v721, %v959
        %v966 = vadd.f32 %v722, %v961
        %967 = vst [vmem:[%s407] sm:$0xff] %v963
        %968 = vst [vmem:[%s407 + $0x8] sm:$0xff] %v964
        %969 = vst [vmem:[%s407 + $0x10] sm:$0xff] %v965
        %970 = vst [vmem:[%s407 + $0x18] sm:$0xff] %v966
        %s971 = sand.u32 %s216, 1
        %s972 = scalar_lea.sflag [#allocation5], %s971
        %s973 = sand.u32 %s216, 1
        %s974 = smul.addr %s973, 32
        %s975 = scalar_lea.vmem [#allocation9], %s974
        // Predicated region
        $region65: #{tpu_custom_call.1} parent=43 // pred_check
          %p976 = pneg %p226
        $region66: #{tpu_custom_call.1} parent=43 // pred_check_branch
          %978 = sbr.rel (%p976) target = $region68
        $region67: #{tpu_custom_call.1} parent=43 // pred_region
          %s979 = smul.u32 %s29, 2
          %s980 = sadd.s32 %s979, %s30
          %s981 = smul.u32 2, %s980
          %s983 = ssub.s32 512, 512
          %984 = vsyncadd %s972, %s983
          %s985 = smul.addr %s981, 128
          %s986 = scalar_lea.hbm %s6, %s985
          %s987 = sshll.u32 %s975, 4
          %s988 = int_to_ptr.vmem [resolvable:$true] %s987
          %993 = dma.vmem_to_hbm [thread:$0]  %s988, 512, %s986, %s972, 256, 512, 16
        $region68: #{tpu_custom_call.1} parent=43 // pred_fallthru
          _
      $region44: #{tpu_custom_call.1} parent=5 // pred_fallthru
        _
      %p994 = scmp.le.s32.totalorder 2, %s19
      // Predicated region
      $region69: #{tpu_custom_call.1} parent=5 // pred_check
        %p995 = pneg %p994
      $region70: #{tpu_custom_call.1} parent=5 // pred_check_branch
        %997 = sbr.rel (%p995) target = $region72
      $region71: #{tpu_custom_call.1} parent=5 // pred_region
        %s998 = ssub.s32 %s19, 2
        // Predicated region
        $region73: #{tpu_custom_call.1} parent=71 // pred_check
          %p999 = pneg %p232
        $region74: #{tpu_custom_call.1} parent=71 // pred_check_branch
          %1001 = sbr.rel (%p999) target = $region76
        $region75: #{tpu_custom_call.1} parent=71 // pred_region
          %s1002 = sand.u32 %s217, 1
          %s1003 = scalar_lea.sflag [#allocation5], %s1002
          %s1004 = sand.u32 %s217, 1
          %s1005 = smul.addr %s1004, 32
          %s1006 = scalar_lea.vmem [#allocation9], %s1005
          %1007 = dma.done %s1003, 512
        $region76: #{tpu_custom_call.1} parent=71 // pred_fallthru
          _
      $region72: #{tpu_custom_call.1} parent=5 // pred_fallthru
        _
    $region6: #{tpu_custom_call.1} parent=1 // loop_footer
      %s23 = sadd.s32 1, %s19
    $region7: #{tpu_custom_call.1} parent=1 // loop_footer_branch
      %18 = sbr.rel target = $region3
    $region8: #{tpu_custom_call.1} parent=1 // loop_exit
      _
    %1008 = vsyncpa [#allocation4], 1
    %s1009 = scalar_lea.sflag [#allocation4], 1
    %1010 = vsyncpa %s1009, 1
    %1011 = vsyncpa [#allocation7], 1
    %s1012 = scalar_lea.sflag [#allocation7], 1
    %1013 = vsyncpa %s1012, 1
    %1014 = vsyncpa [#allocation5], 1
    %s1015 = scalar_lea.sflag [#allocation5], 1
    %1016 = vsyncpa %s1015, 1

// kernel: tpu_custom_call.1
$region0: #{tpu_custom_call.1}
  #allocation0 [shape = 'u32[]', space=smem, size = 0x4, offset = 0x4, fixed_abs, tag = 'smem constant byte address 0x4 - core index']
  #allocation1 [shape = 'u32[144,128]{1,0:T(1,128)}', space=vmem, size = 0x12000, scoped, tag = 'internal scratch']
  #allocation2 [shape = 'bf16[2,16,256]{2,1,0:T(16,128)(2,1)}', space=vmem, size = 0x4000, scoped, tag = 'scratch operand']
  %s0 = inlined_call_operand.hbm [shape: bf16[16,128], index: 0, kind: input, shape index: {}]
  %s1 = inlined_call_operand.hbm [shape: bf16[128,512], index: 1, kind: input, shape index: {}]
  %s2 = inlined_call_operand.vmem [shape: f32[1,512], index: 2, kind: input, shape index: {}]
  %s3 = inlined_call_operand.vmem [shape: f32[1,512], index: 3, kind: input, shape index: {}]
  %s4 = inlined_call_operand.hbm [shape: bf16[512,512], index: 4, kind: input, shape index: {}]
  %s5 = inlined_call_operand.vmem [shape: f32[1,512], index: 5, kind: input, shape index: {}]
  %s6 = inlined_call_operand.hbm [shape: f32[16,512], index: 6, kind: output, shape index: {}]
  %s7 = sld [smem:[#allocation0]]
  $region77: #{tpu_custom_call.1} parent=0
    _
  %s9 = ssub.s32 1, %s7
  %s10 = scalar_select 0, %s9, %s7
  $region1: #{tpu_custom_call.1} parent=0
    #allocation3 [shape = 'u8[4096]{0}', space=vmem, size = 0x1000, scoped, tag = 'input window, operand 0, single buffered']
    #allocation4 [shape = 's32[2]{0}', space=sflag, size = 0x8, scoped, tag = 'scoped memory for tpu_custom_call.1']
    #allocation5 [shape = 's32[2]{0}', space=sflag, size = 0x8, scoped, tag = 'scoped memory for tpu_custom_call.1']
    #allocation6 [shape = 'u8[131072]{0}', space=vmem, size = 0x20000, scoped, tag = 'input window, operand 1']
    #allocation7 [shape = 's32[2]{0}', space=sflag, size = 0x8, scoped, tag = 'scoped memory for tpu_custom_call.1']
    #allocation8 [shape = 'u8[262144]{0}', space=vmem, size = 0x40000, scoped, tag = 'input window, operand 4']
    #allocation9 [shape = 'u8[32768]{0}', space=vmem, size = 0x8000, scoped, tag = 'output window, operand 0']
    %11 = vsyncpa [#allocation4], 0
    %12 = vsyncpa [#allocation7], 0
    %s13 = scalar_lea.sflag [#allocation7], 1
    %14 = vsyncpa %s13, 0
    %15 = vsyncpa [#allocation5], 0
    %s16 = scalar_lea.sflag [#allocation5], 1
    %17 = vsyncpa %s16, 0
    loop: start=0, step=1, limit=6
    $region2: #{tpu_custom_call.1} parent=1 // loop_pre_header
      _
    $region3: #{tpu_custom_call.1} parent=1 // loop_header
      %s19 = sphi 0, %s23
      %p20 = scmp.ge.s32.totalorder %s19, 6
      %s26 = sphi 0, %s45
      %s27 = sphi 0, %s41
      %s28 = sphi 0, %s37
      %s29 = sphi 0, %s26
      %s30 = sphi 0, %s27
      %s31 = sphi 0, %s28
      %s32 = sphi 0, %s29
      %s33 = sphi 0, %s30
      %s34 = sphi 0, %s31
      %s46 = sphi 0, %s46
      %s48 = sphi 0, %s46
      %s49 = sphi 0, %s48
      %s63 = sphi 0, %s49
      %s69 = sphi 0, %s71
      %s72 = sphi 0, %s69
      %s73 = sphi 0, %s72
      %s89 = sphi 0, %s73
      %s95 = sphi 0, %s97
      %s98 = sphi 0, %s95
      %s99 = sphi 0, %s98
      %s115 = sphi 0, %s99
      %s121 = sphi 0, %s123
      %s124 = sphi 0, %s121
      %s125 = sphi 0, %s124
      %s141 = sphi 0, %s125
      %s153 = sphi 0, %s155
      %s156 = sphi 0, %s153
      %s157 = sphi 0, %s156
      %s173 = sphi 0, %s157
      %s183 = sphi 0, %s185
      %s186 = sphi 0, %s183
      %s187 = sphi 0, %s186
      %s203 = sphi 0, %s187
      %s213 = sphi 0, %s215
      %s216 = sphi 0, %s213
      %s217 = sphi 0, %s216
      %s233 = sphi 0, %s217
    $region4: #{tpu_custom_call.1} parent=1 // loop_header_branch
      %22 = sbr.rel (%p20) target = $region8
    $region5: #{tpu_custom_call.1} parent=1 // loop_body
      %s24 = ssub.s32 %s19, 1
      %s25 = ssub.s32 %s19, 2
      %s35 = sadd.s32 1, %s28
      %p36 = scmp.ge.s32.totalorder %s35, 2
      %s37 = scalar_select %p36, 0, %s35
      %s38 = sadd.s32 1, %s27
      %s39 = scalar_select %p36, %s38, %s27
      %p40 = scmp.ge.s32.totalorder %s39, 2
      %s41 = scalar_select %p40, 0, %s39
      %s42 = sadd.s32 1, %s26
      %s43 = scalar_select %p40, %s42, %s26
      %p44 = scmp.ge.s32.totalorder %s43, 1
      %s45 = scalar_select %p44, 0, %s43
      %s47 = sadd.s32 %s46, 1
      %p50 = scmp.eq.s32.totalorder %s19, 3
      %p51 = scmp.ne.s32.totalorder %s46, %s48
      %p52 = scmp.eq.s32.totalorder %s19, 0
      %p53 = por %p51, %p52
      %p54 = scmp.ne.s32.totalorder %s46, %s48
      %p55 = scmp.eq.s32.totalorder %s24, 3
      %p56 = por %p54, %p55
      %p57 = scmp.ne.s32.totalorder %s48, %s49
      %p58 = scmp.eq.s32.totalorder %s24, 0
      %p59 = por %p57, %p58
      %p60 = scmp.ne.s32.totalorder %s48, %s49
      %p61 = scmp.eq.s32.totalorder %s25, 3
      %p62 = por %p60, %p61
      %p64 = scmp.ne.s32.totalorder %s49, %s63
      %p65 = scmp.eq.s32.totalorder %s25, 0
      %p66 = por %p64, %p65
      %s67 = ssub.s32 %s28, %s37
      %p68 = scmp.eq.s32.totalorder %s67, 0
      %s70 = sadd.s32 %s69, 1
      %s71 = scalar_select %p68, %s69, %s70
      %p74 = pneg %p68
      %p75 = scmp.eq.s32.totalorder %s19, 3
      %p76 = por %p74, %p75
      %p77 = scmp.ne.s32.totalorder %s69, %s72
      %p78 = scmp.eq.s32.totalorder %s19, 0
      %p79 = por %p77, %p78
      %p80 = scmp.ne.s32.totalorder %s69, %s72
      %p81 = scmp.eq.s32.totalorder %s24, 3
      %p82 = por %p80, %p81
      %p83 = scmp.ne.s32.totalorder %s72, %s73
      %p84 = scmp.eq.s32.totalorder %s24, 0
      %p85 = por %p83, %p84
      %p86 = scmp.ne.s32.totalorder %s72, %s73
      %p87 = scmp.eq.s32.totalorder %s25, 3
      %p88 = por %p86, %p87
      %p90 = scmp.ne.s32.totalorder %s73, %s89
      %p91 = scmp.eq.s32.totalorder %s25, 0
      %p92 = por %p90, %p91
      %s93 = ssub.s32 %s28, %s37
      %p94 = scmp.eq.s32.totalorder %s93, 0
      %s96 = sadd.s32 %s95, 1
      %s97 = scalar_select %p94, %s95, %s96
      %p100 = pneg %p94
      %p101 = scmp.eq.s32.totalorder %s19, 3
      %p102 = por %p100, %p101
      %p103 = scmp.ne.s32.totalorder %s95, %s98
      %p104 = scmp.eq.s32.totalorder %s19, 0
      %p105 = por %p103, %p104
      %p106 = scmp.ne.s32.totalorder %s95, %s98
      %p107 = scmp.eq.s32.totalorder %s24, 3
      %p108 = por %p106, %p107
      %p109 = scmp.ne.s32.totalorder %s98, %s99
      %p110 = scmp.eq.s32.totalorder %s24, 0
      %p111 = por %p109, %p110
      %p112 = scmp.ne.s32.totalorder %s98, %s99
      %p113 = scmp.eq.s32.totalorder %s25, 3
      %p114 = por %p112, %p113
      %p116 = scmp.ne.s32.totalorder %s99, %s115
      %p117 = scmp.eq.s32.totalorder %s25, 0
      %p118 = por %p116, %p117
      %s119 = ssub.s32 %s28, %s37
      %p120 = scmp.eq.s32.totalorder %s119, 0
      %s122 = sadd.s32 %s121, 1
      %s123 = scalar_select %p120, %s121, %s122
      %p126 = pneg %p120
      %p127 = scmp.eq.s32.totalorder %s19, 3
      %p128 = por %p126, %p127
      %p129 = scmp.ne.s32.totalorder %s121, %s124
      %p130 = scmp.eq.s32.totalorder %s19, 0
      %p131 = por %p129, %p130
      %p132 = scmp.ne.s32.totalorder %s121, %s124
      %p133 = scmp.eq.s32.totalorder %s24, 3
      %p134 = por %p132, %p133
      %p135 = scmp.ne.s32.totalorder %s124, %s125
      %p136 = scmp.eq.s32.totalorder %s24, 0
      %p137 = por %p135, %p136
      %p138 = scmp.ne.s32.totalorder %s124, %s125
      %p139 = scmp.eq.s32.totalorder %s25, 3
      %p140 = por %p138, %p139
      %p142 = scmp.ne.s32.totalorder %s125, %s141
      %p143 = scmp.eq.s32.totalorder %s25, 0
      %p144 = por %p142, %p143
      %s145 = smul.u32 %s26, 2
      %s146 = sadd.s32 %s145, %s27
      %s147 = smul.u32 %s45, 2
      %s148 = sadd.s32 %s147, %s41
      %s149 = ssub.s32 %s28, %s37
      %s150 = ssub.s32 %s146, %s148
      %s151 = sor.u32 %s149, %s150
      %p152 = scmp.eq.s32.totalorder %s151, 0
      %s154 = sadd.s32 %s153, 1
      %s155 = scalar_select %p152, %s153, %s154
      %p158 = pneg %p152
      %p159 = scmp.eq.s32.totalorder %s19, 3
      %p160 = por %p158, %p159
      %p161 = scmp.ne.s32.totalorder %s153, %s156
      %p162 = scmp.eq.s32.totalorder %s19, 0
      %p163 = por %p161, %p162
      %p164 = scmp.ne.s32.totalorder %s153, %s156
      %p165 = scmp.eq.s32.totalorder %s24, 3
      %p166 = por %p164, %p165
      %p167 = scmp.ne.s32.totalorder %s156, %s157
      %p168 = scmp.eq.s32.totalorder %s24, 0
      %p169 = por %p167, %p168
      %p170 = scmp.ne.s32.totalorder %s156, %s157
      %p171 = scmp.eq.s32.totalorder %s25, 3
      %p172 = por %p170, %p171
      %p174 = scmp.ne.s32.totalorder %s157, %s173
      %p175 = scmp.eq.s32.totalorder %s25, 0
      %p176 = por %p174, %p175
      %s177 = smul.u32 %s26, 2
      %s178 = sadd.s32 %s177, %s27
      %s179 = smul.u32 %s45, 2
      %s180 = sadd.s32 %s179, %s41
      %s181 = ssub.s32 %s178, %s180
      %p182 = scmp.eq.s32.totalorder %s181, 0
      %s184 = sadd.s32 %s183, 1
      %s185 = scalar_select %p182, %s183, %s184
      %p188 = pneg %p182
      %p189 = scmp.eq.s32.totalorder %s19, 3
      %p190 = por %p188, %p189
      %p191 = scmp.ne.s32.totalorder %s183, %s186
      %p192 = scmp.eq.s32.totalorder %s19, 0
      %p193 = por %p191, %p192
      %p194 = scmp.ne.s32.totalorder %s183, %s186
      %p195 = scmp.eq.s32.totalorder %s24, 3
      %p196 = por %p194, %p195
      %p197 = scmp.ne.s32.totalorder %s186, %s187
      %p198 = scmp.eq.s32.totalorder %s24, 0
      %p199 = por %p197, %p198
      %p200 = scmp.ne.s32.totalorder %s186, %s187
      %p201 = scmp.eq.s32.totalorder %s25, 3
      %p202 = por %p200, %p201
      %p204 = scmp.ne.s32.totalorder %s187, %s203
      %p205 = scmp.eq.s32.totalorder %s25, 0
      %p206 = por %p204, %p205
      %s207 = smul.u32 %s26, 2
      %s208 = sadd.s32 %s207, %s27
      %s209 = smul.u32 %s45, 2
      %s210 = sadd.s32 %s209, %s41
      %s211 = ssub.s32 %s208, %s210
      %p212 = scmp.eq.s32.totalorder %s211, 0
      %s214 = sadd.s32 %s213, 1
      %s215 = scalar_select %p212, %s213, %s214
      %p218 = pneg %p212
      %p219 = scmp.eq.s32.totalorder %s19, 3
      %p220 = por %p218, %p219
      %p221 = scmp.ne.s32.totalorder %s213, %s216
      %p222 = scmp.eq.s32.totalorder %s19, 0
      %p223 = por %p221, %p222
      %p224 = scmp.ne.s32.totalorder %s213, %s216
      %p225 = scmp.eq.s32.totalorder %s24, 3
      %p226 = por %p224, %p225
      %p227 = scmp.ne.s32.totalorder %s216, %s217
      %p228 = scmp.eq.s32.totalorder %s24, 0
      %p229 = por %p227, %p228
      %p230 = scmp.ne.s32.totalorder %s216, %s217
      %p231 = scmp.eq.s32.totalorder %s25, 3
      %p232 = por %p230, %p231
      %p234 = scmp.ne.s32.totalorder %s217, %s233
      %p235 = scmp.eq.s32.totalorder %s25, 0
      %p236 = por %p234, %p235
      %p237 = scmp.le.s32.totalorder 1, %s19
      %p238 = scmp.lt.s32.totalorder %s19, 5
      %p239 = pnand %p237, %p238
      %p240 = pneg %p239
      // Predicated region
      $region9: #{tpu_custom_call.1} parent=5 // pred_check
        _
      $region10: #{tpu_custom_call.1} parent=5 // pred_check_branch
        %242 = sbr.rel (%p239) target = $region12
      $region11: #{tpu_custom_call.1} parent=5 // pred_region
        %s243 = ssub.s32 %s19, 1
        // Predicated region
        $region13: #{tpu_custom_call.1} parent=11 // pred_check
          %p244 = pneg %p59
        $region14: #{tpu_custom_call.1} parent=11 // pred_check_branch
          %246 = sbr.rel (%p244) target = $region16
        $region15: #{tpu_custom_call.1} parent=11 // pred_region
          %s248 = ssub.s32 128, 128
          %249 = vsyncadd [#allocation4], %s248
          %s250 = sshll.u32 [#allocation3], 4
          %s251 = int_to_ptr.vmem [resolvable:$true] %s250
          %256 = dma.hbm_to_vmem [thread:$0]  %s0, 128, %s251, [#allocation4], 64, 64, 4
        $region16: #{tpu_custom_call.1} parent=11 // pred_fallthru
          _
      $region12: #{tpu_custom_call.1} parent=5 // pred_fallthru
        _
      %p257 = scmp.lt.s32.totalorder %s19, 4
      // Predicated region
      $region17: #{tpu_custom_call.1} parent=5 // pred_check
        %p258 = pneg %p257
      $region18: #{tpu_custom_call.1} parent=5 // pred_check_branch
        %260 = sbr.rel (%p258) target = $region20
      $region19: #{tpu_custom_call.1} parent=5 // pred_region
        // Predicated region
        $region21: #{tpu_custom_call.1} parent=19 // pred_check
          %p261 = pneg %p79
        $region22: #{tpu_custom_call.1} parent=19 // pred_check_branch
          %263 = sbr.rel (%p261) target = $region24
        $region23: #{tpu_custom_call.1} parent=19 // pred_region
          %s264 = sand.u32 %s19, 1
          %s265 = scalar_lea.sflag [#allocation7], %s264
          %s266 = sand.u32 %s69, 1
          %s267 = smul.addr %s266, 128
          %s268 = scalar_lea.vmem [#allocation6], %s267
          %s269 = smul.u32 2, %s28
          %s271 = ssub.s32 2048, 2048
          %272 = vsyncadd %s265, %s271
          %s273 = smul.addr %s269, 64
          %s274 = scalar_lea.hbm %s1, %s273
          %s275 = sshll.u32 %s268, 4
          %s276 = int_to_ptr.vmem [resolvable:$true] %s275
          %281 = dma.hbm_to_vmem [thread:$0]  %s274, 2048, %s276, %s265, 256, 128, 8
        $region24: #{tpu_custom_call.1} parent=19 // pred_fallthru
          _
        // Predicated region
        $region25: #{tpu_custom_call.1} parent=19 // pred_check
          %p282 = pneg %p105
        $region26: #{tpu_custom_call.1} parent=19 // pred_check_branch
          %284 = sbr.rel (%p282) target = $region28
        $region27: #{tpu_custom_call.1} parent=19 // pred_region
          %s285 = smul.u32 2, %s28
          %p286 = scmp.lt.s32.totalorder %s285, 3
          %s287 = scalar_select %p286, %s285, 3
          %s288 = scalar_lea.vmem %s2, %s287
          %s289 = smul.u32 2, %s28
        $region28: #{tpu_custom_call.1} parent=19 // pred_fallthru
          _
        // Predicated region
        $region29: #{tpu_custom_call.1} parent=19 // pred_check
          %p290 = pneg %p131
        $region30: #{tpu_custom_call.1} parent=19 // pred_check_branch
          %292 = sbr.rel (%p290) target = $region32
        $region31: #{tpu_custom_call.1} parent=19 // pred_region
          %s293 = smul.u32 2, %s28
          %p294 = scmp.lt.s32.totalorder %s293, 3
          %s295 = scalar_select %p294, %s293, 3
          %s296 = scalar_lea.vmem %s3, %s295
          %s297 = smul.u32 2, %s28
        $region32: #{tpu_custom_call.1} parent=19 // pred_fallthru
          _
        // Predicated region
        $region33: #{tpu_custom_call.1} parent=19 // pred_check
          %p298 = pneg %p163
        $region34: #{tpu_custom_call.1} parent=19 // pred_check_branch
          %300 = sbr.rel (%p298) target = $region36
        $region35: #{tpu_custom_call.1} parent=19 // pred_region
          %s301 = sand.u32 %s19, 1
          %s302 = scalar_lea.sflag [#allocation7], %s301
          %s303 = sand.u32 %s153, 1
          %s304 = smul.addr %s303, 256
          %s305 = scalar_lea.vmem [#allocation8], %s304
          %s306 = smul.u32 %s26, 2
          %s307 = sadd.s32 %s306, %s27
          %s308 = smul.u32 32, %s28
          %s309 = smul.u32 2, %s307
          %s311 = ssub.s32 4096, 4096
          %312 = vsyncadd %s302, %s311
          %s313 = smul.addr %s308, 4
          %s314 = sadd.s32 %s309, %s313
          %s315 = smul.addr %s314, 64
          %s316 = scalar_lea.hbm %s4, %s315
          %s317 = sshll.u32 %s305, 4
          %s318 = int_to_ptr.vmem [resolvable:$true] %s317
          %323 = dma.hbm_to_vmem [thread:$0]  %s316, 4096, %s318, %s302, 256, 128, 8
        $region36: #{tpu_custom_call.1} parent=19 // pred_fallthru
          _
        // Predicated region
        $region37: #{tpu_custom_call.1} parent=19 // pred_check
          %p324 = pneg %p193
        $region38: #{tpu_custom_call.1} parent=19 // pred_check_branch
          %326 = sbr.rel (%p324) target = $region40
        $region39: #{tpu_custom_call.1} parent=19 // pred_region
          %s327 = smul.u32 %s26, 2
          %s328 = sadd.s32 %s327, %s27
          %s329 = smul.u32 2, %s328
          %p330 = scmp.lt.s32.totalorder %s329, 3
          %s331 = scalar_select %p330, %s329, 3
          %s332 = scalar_lea.vmem %s5, %s331
          %s333 = smul.u32 %s26, 2
          %s334 = sadd.s32 %s333, %s27
          %s335 = smul.u32 2, %s334
        $region40: #{tpu_custom_call.1} parent=19 // pred_fallthru
          _
      $region20: #{tpu_custom_call.1} parent=5 // pred_fallthru
        _
      %p336 = scmp.le.s32.totalorder 1, %s19
      %p337 = scmp.lt.s32.totalorder %s19, 5
      %p338 = pnand %p336, %p337
      %p339 = pneg %p338
      // Predicated region
      $region41: #{tpu_custom_call.1} parent=5 // pred_check
        _
      $region42: #{tpu_custom_call.1} parent=5 // pred_check_branch
        %341 = sbr.rel (%p338) target = $region44
      $region43: #{tpu_custom_call.1} parent=5 // pred_region
        %s342 = ssub.s32 %s19, 1
        // Predicated region
        $region45: #{tpu_custom_call.1} parent=43 // pred_check
          %p343 = pneg %p59
        $region46: #{tpu_custom_call.1} parent=43 // pred_check_branch
          %345 = sbr.rel (%p343) target = $region48
        $region47: #{tpu_custom_call.1} parent=43 // pred_region
          %346 = dma.done [#allocation4], 128
        $region48: #{tpu_custom_call.1} parent=43 // pred_fallthru
          _
        %s347 = sand.u32 %s24, 1
        %s348 = scalar_lea.sflag [#allocation7], %s347
        %s349 = sand.u32 %s72, 1
        %s350 = smul.addr %s349, 128
        %s351 = scalar_lea.vmem [#allocation6], %s350
        // Predicated region
        $region49: #{tpu_custom_call.1} parent=43 // pred_check
          %p352 = pneg %p85
        $region50: #{tpu_custom_call.1} parent=43 // pred_check_branch
          %354 = sbr.rel (%p352) target = $region52
        $region51: #{tpu_custom_call.1} parent=43 // pred_region
          %355 = dma.done %s348, 2048
        $region52: #{tpu_custom_call.1} parent=43 // pred_fallthru
          _
        %s356 = sand.u32 %s24, 1
        %s357 = scalar_lea.sflag [#allocation7], %s356
        %s358 = sand.u32 %s156, 1
        %s359 = smul.addr %s358, 256
        %s360 = scalar_lea.vmem [#allocation8], %s359
        // Predicated region
        $region53: #{tpu_custom_call.1} parent=43 // pred_check
          %p361 = pneg %p169
        $region54: #{tpu_custom_call.1} parent=43 // pred_check_branch
          %363 = sbr.rel (%p361) target = $region56
        $region55: #{tpu_custom_call.1} parent=43 // pred_region
          %364 = dma.done %s357, 4096
        $region56: #{tpu_custom_call.1} parent=43 // pred_fallthru
          _
        %p365 = pneg %p59
        %p366 = pneg %p56
        %s367 = sand.u32 %s24, 1
        %s368 = scalar_lea.sflag [#allocation7], %s367
        %s369 = sand.u32 %s72, 1
        %s370 = smul.addr %s369, 128
        %s371 = scalar_lea.vmem [#allocation6], %s370
        %p372 = pneg %p85
        %p373 = pneg %p82
        %s374 = smul.u32 2, %s31
        %p375 = scmp.lt.s32.totalorder %s374, 3
        %s376 = scalar_select %p375, %s374, 3
        %s377 = scalar_lea.vmem %s2, %s376
        %p378 = pneg %p111
        %p379 = pneg %p108
        %s380 = smul.u32 2, %s31
        %p381 = scmp.lt.s32.totalorder %s380, 3
        %s382 = scalar_select %p381, %s380, 3
        %s383 = scalar_lea.vmem %s3, %s382
        %p384 = pneg %p137
        %p385 = pneg %p134
        %s386 = sand.u32 %s24, 1
        %s387 = scalar_lea.sflag [#allocation7], %s386
        %s388 = sand.u32 %s156, 1
        %s389 = smul.addr %s388, 256
        %s390 = scalar_lea.vmem [#allocation8], %s389
        %p391 = pneg %p169
        %p392 = pneg %p166
        %s393 = smul.u32 %s29, 2
        %s394 = sadd.s32 %s393, %s30
        %s395 = smul.u32 2, %s394
        %p396 = scmp.lt.s32.totalorder %s395, 3
        %s397 = scalar_select %p396, %s395, 3
        %s398 = scalar_lea.vmem %s5, %s397
        %p399 = pneg %p199
        %p400 = pneg %p196
        %p401 = pneg %p229
        %p402 = pneg %p226
        %s403 = sand.u32 %s216, 1
        %s404 = scalar_lea.sflag [#allocation5], %s403
        %s405 = sand.u32 %s216, 1
        %s406 = smul.addr %s405, 32
        %s407 = scalar_lea.vmem [#allocation9], %s406
        %s408 = smul.u32 2, %s31
        %s409 = smul.u32 2, %s31
        %p410 = scmp.lt.s32.totalorder %s409, 3
        %s411 = scalar_select %p410, %s409, 3
        %s412 = scalar_lea.vmem %s2, %s411
        %s413 = smul.u32 2, %s31
        %s414 = smul.u32 2, %s31
        %p415 = scmp.lt.s32.totalorder %s414, 3
        %s416 = scalar_select %p415, %s414, 3
        %s417 = scalar_lea.vmem %s3, %s416
        %s418 = smul.u32 2, %s31
        %s419 = smul.u32 %s29, 2
        %s420 = sadd.s32 %s419, %s30
        %s421 = smul.u32 32, %s31
        %s422 = smul.u32 2, %s420
        %s423 = smul.u32 %s29, 2
        %s424 = sadd.s32 %s423, %s30
        %s425 = smul.u32 2, %s424
        %p426 = scmp.lt.s32.totalorder %s425, 3
        %s427 = scalar_select %p426, %s425, 3
        %s428 = scalar_lea.vmem %s5, %s427
        %s429 = smul.u32 %s29, 2
        %s430 = sadd.s32 %s429, %s30
        %s431 = smul.u32 2, %s430
        %s432 = smul.u32 %s29, 2
        %s433 = sadd.s32 %s432, %s30
        %s434 = smul.u32 2, %s433
        %p436 = scmp.eq.s32.totalorder %s30, 0
        // Predicated region
        $region57: #{tpu_custom_call.1} parent=43 // pred_check
          %p437 = pneg %p436
        $region58: #{tpu_custom_call.1} parent=43 // pred_check_branch
          %439 = sbr.rel (%p437) target = $region60
        $region59: #{tpu_custom_call.1} parent=43 // pred_region
          %v440 = vld [vmem:[#allocation3] sm:$0xf]
          %v441 = vld [vmem:[#allocation3 + $0x4] sm:$0xf]
          %v442 = vld [vmem:[%s351] sm:$0xff]
          %v443 = vld [vmem:[%s351 + $0x8] sm:$0xff]
          %v444 = vld [vmem:[%s351 + $0x10] sm:$0xff]
          %v445 = vld [vmem:[%s351 + $0x18] sm:$0xff]
          %v446 = vld [vmem:[%s351 + $0x20] sm:$0xff]
          %v447 = vld [vmem:[%s351 + $0x28] sm:$0xff]
          %v448 = vld [vmem:[%s351 + $0x30] sm:$0xff]
          %v449 = vld [vmem:[%s351 + $0x38] sm:$0xff]
          %v450 = vld [vmem:[%s351 + $0x40] sm:$0xff]
          %v451 = vld [vmem:[%s351 + $0x48] sm:$0xff]
          %v452 = vld [vmem:[%s351 + $0x50] sm:$0xff]
          %v453 = vld [vmem:[%s351 + $0x58] sm:$0xff]
          %v454 = vld [vmem:[%s351 + $0x60] sm:$0xff]
          %v455 = vld [vmem:[%s351 + $0x68] sm:$0xff]
          %v456 = vld [vmem:[%s351 + $0x70] sm:$0xff]
          %v457 = vld [vmem:[%s351 + $0x78] sm:$0xff]
          %v460 = vunpack.c.l.b16 %v440
          %v461 = vunpack.c.l.b16 %v441
          %v462 = vpack.c.b16 %v461, %v460
          %v480 = vunpack.c.l.b16 %v442
          %v481 = vunpack.c.h.b16 %v442
          %v482 = vunpack.c.l.b16 %v443
          %v483 = vunpack.c.h.b16 %v443
          %v484 = vunpack.c.l.b16 %v444
          %v485 = vunpack.c.h.b16 %v444
          %v486 = vunpack.c.l.b16 %v445
          %v487 = vunpack.c.h.b16 %v445
          %v488 = vunpack.c.l.b16 %v446
          %v489 = vunpack.c.h.b16 %v446
          %v490 = vunpack.c.l.b16 %v447
          %v491 = vunpack.c.h.b16 %v447
          %v492 = vunpack.c.l.b16 %v448
          %v493 = vunpack.c.h.b16 %v448
          %v494 = vunpack.c.l.b16 %v449
          %v495 = vunpack.c.h.b16 %v449
          %v496 = vunpack.c.l.b16 %v450
          %v497 = vunpack.c.h.b16 %v450
          %v498 = vunpack.c.l.b16 %v451
          %v499 = vunpack.c.h.b16 %v451
          %v500 = vunpack.c.l.b16 %v452
          %v501 = vunpack.c.h.b16 %v452
          %v502 = vunpack.c.l.b16 %v453
          %v503 = vunpack.c.h.b16 %v453
          %v504 = vunpack.c.l.b16 %v454
          %v505 = vunpack.c.h.b16 %v454
          %v506 = vunpack.c.l.b16 %v455
          %v507 = vunpack.c.h.b16 %v455
          %v508 = vunpack.c.l.b16 %v456
          %v509 = vunpack.c.h.b16 %v456
          %v510 = vunpack.c.l.b16 %v457
          %v511 = vunpack.c.h.b16 %v457
          %v512 = vpack.c.b16 %v482, %v480
          %v513 = vpack.c.b16 %v483, %v481
          %v514 = vpack.c.b16 %v486, %v484
          %v515 = vpack.c.b16 %v487, %v485
          %v516 = vpack.c.b16 %v490, %v488
          %v517 = vpack.c.b16 %v491, %v489
          %v518 = vpack.c.b16 %v494, %v492
          %v519 = vpack.c.b16 %v495, %v493
          %v520 = vpack.c.b16 %v498, %v496
          %v521 = vpack.c.b16 %v499, %v497
          %v522 = vpack.c.b16 %v502, %v500
          %v523 = vpack.c.b16 %v503, %v501
          %v524 = vpack.c.b16 %v506, %v504
          %v525 = vpack.c.b16 %v507, %v505
          %v526 = vpack.c.b16 %v510, %v508
          %v527 = vpack.c.b16 %v511, %v509
          %544 = vmatprep.subr.bf16.mxu0 %v513
          %545 = vmatpush1.bf16.msra.mxu0 %v512
          %546 = vmatprep.subr.bf16.mxu0 %v515
          %547 = vmatpush1.bf16.msra.mxu0 %v514
          %548 = vmatprep.subr.bf16.mxu0 %v517
          %549 = vmatpush1.bf16.msra.mxu0 %v516
          %550 = vmatprep.subr.bf16.mxu0 %v519
          %551 = vmatpush1.bf16.msra.mxu0 %v518
          %552 = vmatprep.subr.bf16.mxu0 %v521
          %553 = vmatpush1.bf16.msra.mxu0 %v520
          %554 = vmatprep.subr.bf16.mxu0 %v523
          %555 = vmatpush1.bf16.msra.mxu0 %v522
          %556 = vmatprep.subr.bf16.mxu0 %v525
          %557 = vmatpush1.bf16.msra.mxu0 %v524
          %558 = vmatprep.subr.bf16.mxu0 %v527
          %559 = vmatpush1.bf16.msra.mxu0 %v526
          %560 = vmatprep.subr.bf16.mxu0 0
          %561 = vmatpush1.bf16.msra.mxu0 0
          %562 = vmatprep.subr.bf16.mxu0 0
          %563 = vmatpush1.bf16.msra.mxu0 0
          %564 = vmatprep.subr.bf16.mxu0 0
          %565 = vmatpush1.bf16.msra.mxu0 0
          %566 = vmatprep.subr.bf16.mxu0 0
          %567 = vmatpush1.bf16.msra.mxu0 0
          %568 = vmatprep.subr.bf16.mxu0 0
          %569 = vmatpush1.bf16.msra.mxu0 0
          %570 = vmatprep.subr.bf16.mxu0 0
          %571 = vmatpush1.bf16.msra.mxu0 0
          %572 = vmatprep.subr.bf16.mxu0 0
          %573 = vmatpush1.bf16.msra.mxu0 0
          %574 = vmatprep.subr.bf16.mxu0 0
          %575 = vmatpush1.bf16.msra.mxu0 0
          %576 = vmatprep.mubr.bf16.mxu0 0
          %577 = vmatmul.mubr.bf16.gmra.mrb[0].mxu0 %v462
          %v578 = vpop.f32.mrb[0].mxu0
          %v579 = vadd.f32 0.0, %v578
          %v580 = vpop.f32.mrb[0].mxu0
          %v581 = vadd.f32 0.0, %v580
          %v582 = vpop.f32.mrb[0].mxu0
          %v583 = vadd.f32 0.0, %v582
          %v584 = vpop.f32.mrb[0].mxu0
          %v585 = vadd.f32 0.0, %v584
          %586 = vdwg.mxu0
          %v587 = vadd.f32 %v579, %v583
          %v588 = vrot.slane %v587, 4
          %v589 = vadd.f32 %v587, %v588
          %v590 = vrot.slane %v589, 2
          %v591 = vadd.f32 %v589, %v590
          %v592 = vrot.slane %v591, 1
          %v593 = vadd.f32 %v591, %v592
          %v594 = vadd.f32 %v581, %v585
          %v595 = vrot.slane %v594, 4
          %v596 = vadd.f32 %v594, %v595
          %v597 = vrot.slane %v596, 2
          %v598 = vadd.f32 %v596, %v597
          %v599 = vrot.slane %v598, 1
          %v600 = vadd.f32 %v598, %v599
          %v601 = vmul.f32 %v579, %v579
          %v602 = vmul.f32 %v581, %v581
          %v603 = vmul.f32 %v583, %v583
          %v604 = vmul.f32 %v585, %v585
          %v605 = vadd.f32 %v601, %v603
          %v606 = vrot.slane %v605, 4
          %v607 = vadd.f32 %v605, %v606
          %v608 = vrot.slane %v607, 2
          %v609 = vadd.f32 %v607, %v608
          %v610 = vrot.slane %v609, 1
          %v611 = vadd.f32 %v609, %v610
          %v612 = vadd.f32 %v602, %v604
          %v613 = vrot.slane %v612, 4
          %v614 = vadd.f32 %v612, %v613
          %v615 = vrot.slane %v614, 2
          %v616 = vadd.f32 %v614, %v615
          %v617 = vrot.slane %v616, 1
          %v618 = vadd.f32 %v616, %v617
          %v619 = vmul.f32 %v593, 0.071428575
          %v620 = vmul.f32 %v600, 0.071428575
          %v621 = vmul.f32 %v611, 0.071428575
          %v622 = vmul.f32 %v618, 0.071428575
          %v623 = vmul.f32 %v619, %v619
          %v624 = vmul.f32 %v620, %v620
          %v625 = vsub.f32 %v621, %v623
          %v626 = vsub.f32 %v622, %v624
          %v627 = vmax.f32 %v625, 0.0
          %v628 = vmax.f32 %v626, 0.0
          %v629 = vld [vmem:[%s412] sm:$0x3]
          %v630 = vadd.f32 %v627, 1e-05
          %v631 = vadd.f32 %v628, 1e-05
          %v632 = vrsqrt.pop %v630
          %v633 = vrsqrt.pop %v631
          %v636 = vcombine.low %v632, %v633
          %v638 = vunpack.c.l.s4 1966171168
          %v639 = vunpack.c.0.s8 %v638
          %v640 = vlaneseq
          %v641 = vshrl.u32 %v640, 7
          %v642 = vsub.s32 %v639, %v641
          %v643 = vrot.slane %v636, %v642
          %v645 = vunpack.c.l.s4 1966171168
          %v646 = vunpack.c.0.s8 %v645
          %v647 = vlaneseq
          %v648 = vshrl.u32 %v647, 7
          %v649 = vsub.s32 %v646, %v648
          %v650 = vrot.slane %v643, %v649
          %v652 = vmul.f32 %v629, %v650
          %v653 = vsub.f32 %v579, %v619
          %v654 = vsub.f32 %v581, %v620
          %v655 = vsub.f32 %v583, %v619
          %v656 = vsub.f32 %v585, %v620
          %v658 = vlaneseq
          %v659 = vshrl.u32 %v658, 7
          %v660 = vsub.s32 0, %v659
          %v661 = vrot.slane %v652, %v660
          %v662 = vlaneseq
          %v663 = vshrl.u32 %v662, 7
          %v664 = vsub.s32 1, %v663
          %v665 = vrot.slane %v652, %v664
          %v668 = vmul.f32 %v653, %v661
          %v669 = vmul.f32 %v654, %v665
          %v670 = vmul.f32 %v655, %v661
          %v671 = vmul.f32 %v656, %v665
          %v672 = vld [vmem:[%s417] sm:$0x3]
          %v674 = vlaneseq
          %v675 = vshrl.u32 %v674, 7
          %v676 = vsub.s32 0, %v675
          %v677 = vrot.slane %v672, %v676
          %v678 = vlaneseq
          %v679 = vshrl.u32 %v678, 7
          %v680 = vsub.s32 1, %v679
          %v681 = vrot.slane %v672, %v680
          %v684 = vadd.f32 %v668, %v677
          %v685 = vadd.f32 %v669, %v681
          %v686 = vadd.f32 %v670, %v677
          %v687 = vadd.f32 %v671, %v681
          %v688 = vmax.f32 %v684, 0.0
          %v689 = vmax.f32 %v685, 0.0
          %v690 = vmax.f32 %v686, 0.0
          %v691 = vmax.f32 %v687, 0.0
          %v692 = vpack.c.bf16 %v690, %v688
          %v693 = vpack.c.bf16 %v691, %v689
          %s694 = smul.u32 %s31, 2
          %s695 = smul.addr %s694, 8
          %s696 = scalar_lea.vmem [#allocation2], %s695
          %697 = vst [vmem:[%s696] sm:$0xff] %v692
          %698 = vst [vmem:[%s696 + $0x8] sm:$0xff] %v693
        $region60: #{tpu_custom_call.1} parent=43 // pred_fallthru
          _
        %p699 = scmp.eq.s32.totalorder %s31, 0
        // Predicated region
        $region61: #{tpu_custom_call.1} parent=43 // pred_check
          %p700 = pneg %p699
        $region62: #{tpu_custom_call.1} parent=43 // pred_check_branch
          %702 = sbr.rel (%p700) target = $region64
        $region63: #{tpu_custom_call.1} parent=43 // pred_region
          %v703 = vld [vmem:[%s428] sm:$0x3]
          %v705 = vlaneseq
          %v706 = vshrl.u32 %v705, 7
          %v707 = vsub.s32 0, %v706
          %v708 = vrot.slane %v703, %v707
          %v709 = vlaneseq
          %v710 = vshrl.u32 %v709, 7
          %v711 = vsub.s32 1, %v710
          %v712 = vrot.slane %v703, %v711
          %715 = vst [vmem:[%s407] sm:$0xff] %v708
          %716 = vst [vmem:[%s407 + $0x8] sm:$0xff] %v712
          %717 = vst [vmem:[%s407 + $0x10] sm:$0xff] %v708
          %718 = vst [vmem:[%s407 + $0x18] sm:$0xff] %v712
        $region64: #{tpu_custom_call.1} parent=43 // pred_fallthru
          _
        %v719 = vld [vmem:[%s407] sm:$0xff]
        %v720 = vld [vmem:[%s407 + $0x8] sm:$0xff]
        %v721 = vld [vmem:[%s407 + $0x10] sm:$0xff]
        %v722 = vld [vmem:[%s407 + $0x18] sm:$0xff]
        %s723 = smul.u32 %s31, 2
        %s724 = smul.addr %s723, 8
        %s725 = scalar_lea.vmem [#allocation2], %s724
        %v726 = vld [vmem:[%s725] sm:$0xff]
        %v727 = vld [vmem:[%s725 + $0x8] sm:$0xff]
        %v728 = vld [vmem:[%s360] sm:$0xff]
        %v729 = vld [vmem:[%s360 + $0x8] sm:$0xff]
        %v730 = vld [vmem:[%s360 + $0x10] sm:$0xff]
        %v731 = vld [vmem:[%s360 + $0x18] sm:$0xff]
        %v732 = vld [vmem:[%s360 + $0x20] sm:$0xff]
        %v733 = vld [vmem:[%s360 + $0x28] sm:$0xff]
        %v734 = vld [vmem:[%s360 + $0x30] sm:$0xff]
        %v735 = vld [vmem:[%s360 + $0x38] sm:$0xff]
        %v736 = vld [vmem:[%s360 + $0x40] sm:$0xff]
        %v737 = vld [vmem:[%s360 + $0x48] sm:$0xff]
        %v738 = vld [vmem:[%s360 + $0x50] sm:$0xff]
        %v739 = vld [vmem:[%s360 + $0x58] sm:$0xff]
        %v740 = vld [vmem:[%s360 + $0x60] sm:$0xff]
        %v741 = vld [vmem:[%s360 + $0x68] sm:$0xff]
        %v742 = vld [vmem:[%s360 + $0x70] sm:$0xff]
        %v743 = vld [vmem:[%s360 + $0x78] sm:$0xff]
        %v744 = vld [vmem:[%s360 + $0x80] sm:$0xff]
        %v745 = vld [vmem:[%s360 + $0x88] sm:$0xff]
        %v746 = vld [vmem:[%s360 + $0x90] sm:$0xff]
        %v747 = vld [vmem:[%s360 + $0x98] sm:$0xff]
        %v748 = vld [vmem:[%s360 + $0xa0] sm:$0xff]
        %v749 = vld [vmem:[%s360 + $0xa8] sm:$0xff]
        %v750 = vld [vmem:[%s360 + $0xb0] sm:$0xff]
        %v751 = vld [vmem:[%s360 + $0xb8] sm:$0xff]
        %v752 = vld [vmem:[%s360 + $0xc0] sm:$0xff]
        %v753 = vld [vmem:[%s360 + $0xc8] sm:$0xff]
        %v754 = vld [vmem:[%s360 + $0xd0] sm:$0xff]
        %v755 = vld [vmem:[%s360 + $0xd8] sm:$0xff]
        %v756 = vld [vmem:[%s360 + $0xe0] sm:$0xff]
        %v757 = vld [vmem:[%s360 + $0xe8] sm:$0xff]
        %v758 = vld [vmem:[%s360 + $0xf0] sm:$0xff]
        %v759 = vld [vmem:[%s360 + $0xf8] sm:$0xff]
        %v792 = vunpack.c.l.b16 %v728
        %v793 = vunpack.c.h.b16 %v728
        %v794 = vunpack.c.l.b16 %v729
        %v795 = vunpack.c.h.b16 %v729
        %v796 = vunpack.c.l.b16 %v730
        %v797 = vunpack.c.h.b16 %v730
        %v798 = vunpack.c.l.b16 %v731
        %v799 = vunpack.c.h.b16 %v731
        %v800 = vunpack.c.l.b16 %v732
        %v801 = vunpack.c.h.b16 %v732
        %v802 = vunpack.c.l.b16 %v733
        %v803 = vunpack.c.h.b16 %v733
        %v804 = vunpack.c.l.b16 %v734
        %v805 = vunpack.c.h.b16 %v734
        %v806 = vunpack.c.l.b16 %v735
        %v807 = vunpack.c.h.b16 %v735
        %v808 = vunpack.c.l.b16 %v736
        %v809 = vunpack.c.h.b16 %v736
        %v810 = vunpack.c.l.b16 %v737
        %v811 = vunpack.c.h.b16 %v737
        %v812 = vunpack.c.l.b16 %v738
        %v813 = vunpack.c.h.b16 %v738
        %v814 = vunpack.c.l.b16 %v739
        %v815 = vunpack.c.h.b16 %v739
        %v816 = vunpack.c.l.b16 %v740
        %v817 = vunpack.c.h.b16 %v740
        %v818 = vunpack.c.l.b16 %v741
        %v819 = vunpack.c.h.b16 %v741
        %v820 = vunpack.c.l.b16 %v742
        %v821 = vunpack.c.h.b16 %v742
        %v822 = vunpack.c.l.b16 %v743
        %v823 = vunpack.c.h.b16 %v743
        %v824 = vunpack.c.l.b16 %v744
        %v825 = vunpack.c.h.b16 %v744
        %v826 = vunpack.c.l.b16 %v745
        %v827 = vunpack.c.h.b16 %v745
        %v828 = vunpack.c.l.b16 %v746
        %v829 = vunpack.c.h.b16 %v746
        %v830 = vunpack.c.l.b16 %v747
        %v831 = vunpack.c.h.b16 %v747
        %v832 = vunpack.c.l.b16 %v748
        %v833 = vunpack.c.h.b16 %v748
        %v834 = vunpack.c.l.b16 %v749
        %v835 = vunpack.c.h.b16 %v749
        %v836 = vunpack.c.l.b16 %v750
        %v837 = vunpack.c.h.b16 %v750
        %v838 = vunpack.c.l.b16 %v751
        %v839 = vunpack.c.h.b16 %v751
        %v840 = vunpack.c.l.b16 %v752
        %v841 = vunpack.c.h.b16 %v752
        %v842 = vunpack.c.l.b16 %v753
        %v843 = vunpack.c.h.b16 %v753
        %v844 = vunpack.c.l.b16 %v754
        %v845 = vunpack.c.h.b16 %v754
        %v846 = vunpack.c.l.b16 %v755
        %v847 = vunpack.c.h.b16 %v755
        %v848 = vunpack.c.l.b16 %v756
        %v849 = vunpack.c.h.b16 %v756
        %v850 = vunpack.c.l.b16 %v757
        %v851 = vunpack.c.h.b16 %v757
        %v852 = vunpack.c.l.b16 %v758
        %v853 = vunpack.c.h.b16 %v758
        %v854 = vunpack.c.l.b16 %v759
        %v855 = vunpack.c.h.b16 %v759
        %v856 = vpack.c.b16 %v794, %v792
        %v857 = vpack.c.b16 %v795, %v793
        %v858 = vpack.c.b16 %v798, %v796
        %v859 = vpack.c.b16 %v799, %v797
        %v860 = vpack.c.b16 %v802, %v800
        %v861 = vpack.c.b16 %v803, %v801
        %v862 = vpack.c.b16 %v806, %v804
        %v863 = vpack.c.b16 %v807, %v805
        %v864 = vpack.c.b16 %v810, %v808
        %v865 = vpack.c.b16 %v811, %v809
        %v866 = vpack.c.b16 %v814, %v812
        %v867 = vpack.c.b16 %v815, %v813
        %v868 = vpack.c.b16 %v818, %v816
        %v869 = vpack.c.b16 %v819, %v817
        %v870 = vpack.c.b16 %v822, %v820
        %v871 = vpack.c.b16 %v823, %v821
        %v872 = vpack.c.b16 %v826, %v824
        %v873 = vpack.c.b16 %v827, %v825
        %v874 = vpack.c.b16 %v830, %v828
        %v875 = vpack.c.b16 %v831, %v829
        %v876 = vpack.c.b16 %v834, %v832
        %v877 = vpack.c.b16 %v835, %v833
        %v878 = vpack.c.b16 %v838, %v836
        %v879 = vpack.c.b16 %v839, %v837
        %v880 = vpack.c.b16 %v842, %v840
        %v881 = vpack.c.b16 %v843, %v841
        %v882 = vpack.c.b16 %v846, %v844
        %v883 = vpack.c.b16 %v847, %v845
        %v884 = vpack.c.b16 %v850, %v848
        %v885 = vpack.c.b16 %v851, %v849
        %v886 = vpack.c.b16 %v854, %v852
        %v887 = vpack.c.b16 %v855, %v853
        %920 = vmatprep.subr.bf16.mxu0 %v857
        %921 = vmatpush1.bf16.msra.mxu0 %v856
        %922 = vmatprep.subr.bf16.mxu0 %v859
        %923 = vmatpush1.bf16.msra.mxu0 %v858
        %924 = vmatprep.subr.bf16.mxu0 %v861
        %925 = vmatpush1.bf16.msra.mxu0 %v860
        %926 = vmatprep.subr.bf16.mxu0 %v863
        %927 = vmatpush1.bf16.msra.mxu0 %v862
        %928 = vmatprep.subr.bf16.mxu0 %v865
        %929 = vmatpush1.bf16.msra.mxu0 %v864
        %930 = vmatprep.subr.bf16.mxu0 %v867
        %931 = vmatpush1.bf16.msra.mxu0 %v866
        %932 = vmatprep.subr.bf16.mxu0 %v869
        %933 = vmatpush1.bf16.msra.mxu0 %v868
        %934 = vmatprep.subr.bf16.mxu0 %v871
        %935 = vmatpush1.bf16.msra.mxu0 %v870
        %936 = vmatprep.subr.bf16.mxu0 %v873
        %937 = vmatpush1.bf16.msra.mxu0 %v872
        %938 = vmatprep.subr.bf16.mxu0 %v875
        %939 = vmatpush1.bf16.msra.mxu0 %v874
        %940 = vmatprep.subr.bf16.mxu0 %v877
        %941 = vmatpush1.bf16.msra.mxu0 %v876
        %942 = vmatprep.subr.bf16.mxu0 %v879
        %943 = vmatpush1.bf16.msra.mxu0 %v878
        %944 = vmatprep.subr.bf16.mxu0 %v881
        %945 = vmatpush1.bf16.msra.mxu0 %v880
        %946 = vmatprep.subr.bf16.mxu0 %v883
        %947 = vmatpush1.bf16.msra.mxu0 %v882
        %948 = vmatprep.subr.bf16.mxu0 %v885
        %949 = vmatpush1.bf16.msra.mxu0 %v884
        %950 = vmatprep.subr.bf16.mxu0 %v887
        %951 = vmatpush1.bf16.msra.mxu0 %v886
        %952 = vmatprep.mubr.bf16.mxu0 %v727
        %953 = vmatmul.mubr.bf16.gmra.mrb[0].mxu0 %v726
        %v954 = vpop.f32.mrb[0].mxu0
        %v955 = vadd.f32 0.0, %v954
        %v956 = vpop.f32.mrb[0].mxu0
        %v957 = vadd.f32 0.0, %v956
        %v958 = vpop.f32.mrb[0].mxu0
        %v959 = vadd.f32 0.0, %v958
        %v960 = vpop.f32.mrb[0].mxu0
        %v961 = vadd.f32 0.0, %v960
        %962 = vdwg.mxu0
        %v963 = vadd.f32 %v719, %v955
        %v964 = vadd.f32 %v720, %v957
        %v965 = vadd.f32 %v721, %v959
        %v966 = vadd.f32 %v722, %v961
        %967 = vst [vmem:[%s407] sm:$0xff] %v963
        %968 = vst [vmem:[%s407 + $0x8] sm:$0xff] %v964
        %969 = vst [vmem:[%s407 + $0x10] sm:$0xff] %v965
        %970 = vst [vmem:[%s407 + $0x18] sm:$0xff] %v966
        %s971 = sand.u32 %s216, 1
        %s972 = scalar_lea.sflag [#allocation5], %s971
        %s973 = sand.u32 %s216, 1
        %s974 = smul.addr %s973, 32
        %s975 = scalar_lea.vmem [#allocation9], %s974
        // Predicated region
        $region65: #{tpu_custom_call.1} parent=43 // pred_check
          %p976 = pneg %p226
        $region66: #{tpu_custom_call.1} parent=43 // pred_check_branch
          %978 = sbr.rel (%p976) target = $region68
        $region67: #{tpu_custom_call.1} parent=43 // pred_region
          %s979 = smul.u32 %s29, 2
          %s980 = sadd.s32 %s979, %s30
          %s981 = smul.u32 2, %s980
          %s983 = ssub.s32 512, 512
          %984 = vsyncadd %s972, %s983
          %s985 = smul.addr %s981, 128
          %s986 = scalar_lea.hbm %s6, %s985
          %s987 = sshll.u32 %s975, 4
          %s988 = int_to_ptr.vmem [resolvable:$true] %s987
          %993 = dma.vmem_to_hbm [thread:$0]  %s988, 512, %s986, %s972, 256, 512, 16
        $region68: #{tpu_custom_call.1} parent=43 // pred_fallthru
          _
      $region44: #{tpu_custom_call.1} parent=5 // pred_fallthru
        _
      %p994 = scmp.le.s32.totalorder 2, %s19
      // Predicated region
      $region69: #{tpu_custom_call.1} parent=5 // pred_check
        %p995 = pneg %p994
      $region70: #{tpu_custom_call.1} parent=5 // pred_check_branch
        %997 = sbr.rel (%p995) target = $region72
      $region71: #{tpu_custom_call.1} parent=5 // pred_region
        %s998 = ssub.s32 %s19, 2
        // Predicated region
        $region73: #{tpu_custom_call.1} parent=71 // pred_check
          %p999 = pneg %p232
        $region74: #{tpu_custom_call.1} parent=71 // pred_check_branch
          %1001 = sbr.rel (%p999) target = $region76
        $region75: #{tpu_custom_call.1} parent=71 // pred_region
          %s1002 = sand.u32 %s217, 1
          %s1003 = scalar_lea.sflag [#allocation5], %s1002
          %s1004 = sand.u32 %s217, 1
          %s1005 = smul.addr %s1004, 32
          %s1006 = scalar_lea.vmem [#allocation9], %s1005
          %1007 = dma.done %s1003, 512
        $region76: #{tpu_custom_call.1} parent=71 // pred_fallthru
          _
      $region72: #{tpu_custom_call.1} parent=5 // pred_fallthru
        _
    $region6: #{tpu_custom_call.1} parent=1 // loop_footer
      %s23 = sadd.s32 1, %s19
    $region7: #{tpu_custom_call.1} parent=1 // loop_footer_branch
      %18 = sbr.rel target = $region3
    $region8: #{tpu_custom_call.1} parent=1 // loop_exit
      _
    %1008 = vsyncpa [#allocation4], 1
    %s1009 = scalar_lea.sflag [#allocation4], 1
    %1010 = vsyncpa %s1009, 1
    %1011 = vsyncpa [#allocation7], 1
    %s1012 = scalar_lea.sflag [#allocation7], 1
    %1013 = vsyncpa %s1012, 1
    %1014 = vsyncpa [#allocation5], 1
    %s1015 = scalar_lea.sflag [#allocation5], 1
    %1016 = vsyncpa %s1015, 1

</llo_original>
